<compile_context>
chip_gen: v5e
topology: v5e:2x2
jax: 0.10.0
libtpu: 0.0.40
codegen_flags: <defaults>
</compile_context>

<pallas_src>
import jax
import jax.numpy as jnp
import numpy as np
from jax.experimental import pallas as pl
from jax.experimental.pallas import tpu as pltpu

N_FILTERS = 20
RNN_HIDDEN = 256
N_BRANCH = 128            # output channels per text-CNN branch
N_CAT = 3 * N_BRANCH      # 384
OUT_LANES = 128           # lane-dense output slab width


def _round_up(x, m):
    return ((x + m - 1) // m) * m


def pal_kernel(trellis_ref, seq_ref, conf_ref,
               w1f_ref, fc1b_ref,
               w2_ref, b2_ref, mask_ref,
               fc2w_ref, fc2b_ref,
               fc3w_ref, fc3b_ref, fcw_ref, fcb_ref,
               out_ref):
    TB = trellis_ref.shape[0]
    Hp, E = seq_ref.shape[1], seq_ref.shape[2]
    NR = Hp - 4              # fused text-conv rows computed (multiple of 8)
    f32 = jnp.float32
    bf16 = jnp.bfloat16

    # ---- x1 path: Conv2d(1, 20, (3, W)) + AvgPool + fc1 (all linear before the
    # ReLU) folded on the host into ONE lane-dense [TB, H*W] @ [H*W, 256] matmul.
    x1 = jnp.maximum(
        jnp.dot(trellis_ref[...], w1f_ref[...], preferred_element_type=f32)
        + fc1b_ref[...], 0.0)                                          # [TB, 256]

    # ---- x2 path: k = 3/4/5 text-CNN branches fused into one im2col matmul.
    # Shifted row slices concatenated on the lane axis -> [TB, NR, 5E]; the fused
    # weight is [5E, 384] with the k=3/k=4 kernels zero-padded along rows.
    seq = seq_ref[...]                                                 # [TB, Hp, E] bf16
    cat = jnp.concatenate(
        [seq[:, kh:kh + NR, :] for kh in range(5)], axis=-1)           # [TB, NR, 5E]
    conv2 = jnp.dot(cat.reshape(TB * NR, 5 * E), w2_ref[...],
                    preferred_element_type=f32)                        # [TB*NR, 384]
    conv2 = jnp.maximum(conv2.reshape(TB, NR, N_CAT) + b2_ref[...], 0.0)

    # Host-precomputed, grid-invariant per-branch row-validity mask (0/1); ReLU
    # output >= 0, so zero-masking is exact for the subsequent max over time.
    # TODO(synk): the reference module's conv22/conv23 MaxPool kernel sizes are
    # inconsistent with their conv output heights (would error in PyTorch); we
    # implement the evident intent: a global max over the temporal axis per branch.
    conv2 = conv2 * mask_ref[...]
    x2cat = jnp.max(conv2, axis=1)                                     # [TB, 384]
    x2 = jnp.maximum(
        jnp.dot(x2cat.astype(bf16), fc2w_ref[...], preferred_element_type=f32)
        + fc2b_ref[...], 0.0)                                          # [TB, 256]

    # ---- x3 path: Linear(1, 256) on the scalar confidence (outer product), relu.
    x3 = jnp.maximum(conf_ref[...] * fc3w_ref[...] + fc3b_ref[...], 0.0)  # [TB, 256]

    # ---- head: Linear(256, 1); weight pre-tiled to 128 lanes -> unmasked
    # lane-dense store (wrapper consumes lane 0 only).
    x = (x1 + x2 + x3).astype(bf16)
    out_ref[...] = jnp.dot(x, fcw_ref[...], preferred_element_type=f32) + fcb_ref[...]


def make_params(key, H, W, E, rnn_hidden=RNN_HIDDEN, n_filters=N_FILTERS):
    ks = jax.random.split(key, 16)

    def init(k, shape, scale=0.05):
        return jax.random.normal(k, shape, dtype=jnp.float32) * scale

    return dict(
        w1=init(ks[0], (3, W, n_filters)),      b1=init(ks[1], (1, n_filters)),
        fc1w=init(ks[2], (n_filters, rnn_hidden)), fc1b=init(ks[3], (1, rnn_hidden)),
        w21=init(ks[4], (3, E, 128)),           b21=init(ks[5], (1, 128)),
        w22=init(ks[6], (4, E, 128)),           b22=init(ks[7], (1, 128)),
        w23=init(ks[8], (5, E, 128)),           b23=init(ks[9], (1, 128)),
        fc2w=init(ks[10], (384, rnn_hidden)),   fc2b=init(ks[11], (1, rnn_hidden)),
        fc3w=init(ks[12], (1, rnn_hidden)),     fc3b=init(ks[13], (1, rnn_hidden)),
        fcw=init(ks[14], (rnn_hidden, 1)),      fcb=init(ks[15], (1, 1)),
    )


def prepare_params(p, para_h):
    """Repack raw PAL parameters into the fused layouts the kernel consumes."""
    H = para_h
    n1 = H - 2
    W = p['w1'].shape[1]
    E = p['w21'].shape[1]
    nf = p['w1'].shape[2]
    NR = _round_up(H - 2, 8)
    bf16 = jnp.bfloat16

    # --- x1 fold: conv1 + avg-pool + fc1 (all linear) -> one [H*W, 256] weight.
    #   pooled[b, f] = (1/n1) * sum_kh sum_h trellis[b, h+kh, :] @ w1[kh, :, f] + b1
    w_eff = jnp.zeros((H, W, nf), jnp.float32)
    for kh in range(3):
        w_eff = w_eff.at[kh:kh + n1].add(p['w1'][kh] / n1)
    w1f = (w_eff.reshape(H * W, nf) @ p['fc1w']).astype(bf16)           # [H*W, 256]
    fc1b = p['b1'] @ p['fc1w'] + p['fc1b']                              # [1, 256]

    # --- fused text-CNN weight [5E, 384]: k=3/4 kernels zero-padded along rows.
    w2f = jnp.zeros((5 * E, N_CAT), jnp.float32)
    w2f = w2f.at[:3 * E, 0:N_BRANCH].set(p['w21'].reshape(3 * E, N_BRANCH))
    w2f = w2f.at[:4 * E, N_BRANCH:2 * N_BRANCH].set(p['w22'].reshape(4 * E, N_BRANCH))
    w2f = w2f.at[:, 2 * N_BRANCH:].set(p['w23'].reshape(5 * E, N_BRANCH))
    w2f = w2f.astype(bf16)
    b2f = jnp.concatenate([p['b21'], p['b22'], p['b23']], axis=1)       # [1, 384]

    # --- grid-invariant per-branch row-validity mask (row + k <= H).
    row = np.arange(NR)[:, None]
    ksz = np.concatenate([np.full(N_BRANCH, k, np.int64) for k in (3, 4, 5)])[None, :]
    mask = jnp.asarray((row + ksz <= H).astype(np.float32))             # [NR, 384]

    fc2w = p['fc2w'].astype(bf16)

    # --- head weight / bias tiled to 128 lanes for an unmasked lane-dense store.
    fcw = jnp.tile(p['fcw'], (1, OUT_LANES)).astype(bf16)               # [256, 128]
    fcb = jnp.tile(p['fcb'], (1, OUT_LANES))                            # [1, 128]

    return (w1f, fc1b, w2f, b2f, mask, fc2w, p['fc2b'],
            p['fc3w'], p['fc3b'], fcw, fcb)


@jax.jit
def pal_forward(trellis_x, seq_x, conf_x, p):
    B, H, W = trellis_x.shape
    E = seq_x.shape[-1]

    # Batch tile: multiple of 8, capped at 256 (matches the 256-wide v6e/v7x MXU).
    # Keep the grid at >= 2 steps whenever more than one tile is possible so the
    # "parallel" batch axis shards across both v7x TensorCores.
    n_steps = max(-(-B // 256), 2 if B > 8 else 1)
    TB = min(256, _round_up(-(-B // n_steps), 8))
    Bp = _round_up(B, TB)

    NR = _round_up(H - 2, 8)       # fused-conv rows computed per sample
    Hp = NR + 4                    # seq rows needed for the k=5 window (zero padded)

    bf16 = jnp.bfloat16
    trellis_p = jnp.pad(trellis_x, ((0, Bp - B), (0, 0), (0, 0))) \
                   .reshape(Bp, H * W).astype(bf16)                     # lane-dense
    seq_p = jnp.pad(seq_x, ((0, Bp - B), (0, Hp - H), (0, 0))).astype(bf16)
    conf_p = jnp.pad(conf_x.reshape(B, 1), ((0, Bp - B), (0, 0)))

    weights = prepare_params(p, H)

    def const_spec(a):
        return pl.BlockSpec(a.shape, lambda i, _n=a.ndim: (0,) * _n)

    in_specs = [
        pl.BlockSpec((TB, H * W), lambda i: (i, 0)),        # flattened trellis
        pl.BlockSpec((TB, Hp, E), lambda i: (i, 0, 0)),     # seq (row-padded)
        pl.BlockSpec((TB, 1), lambda i: (i, 0)),            # confidence column
    ] + [const_spec(w) for w in weights]

    out = pl.pallas_call(
        pal_kernel,
        out_shape=jax.ShapeDtypeStruct((Bp, OUT_LANES), jnp.float32),
        grid=(Bp // TB,),
        in_specs=in_specs,
        out_specs=pl.BlockSpec((TB, OUT_LANES), lambda i: (i, 0)),
        compiler_params=pltpu.CompilerParams(
            dimension_semantics=("parallel",),               # batch axis -> both v7x TCs
            vmem_limit_bytes=32 * 1024 * 1024,
        ),
    )(trellis_p, seq_p, conf_p, *weights)
    return out[:B, :1]                                        # [B, 1]


def pal_reference(trellis_x, seq_x, conf_x, p):
    # Pure-JAX f32 reference mirroring the PyTorch forward (for correctness check).
    B, H, _ = trellis_x.shape

    def conv_rows(x, w):
        k = w.shape[0]
        n = H - k + 1
        return sum(x[kh:kh + n, :] @ w[kh] for kh in range(k))

    outs = []
    for b in range(B):
        c1 = conv_rows(trellis_x[b], p['w1']) + p['b1']
        x1 = jax.nn.relu(jnp.mean(c1, axis=0, keepdims=True) @ p['fc1w'] + p['fc1b'])
        feats = []
        for wk, bk in ((p['w21'], p['b21']), (p['w22'], p['b22']), (p['w23'], p['b23'])):
            c = jax.nn.relu(conv_rows(seq_x[b], wk) + bk)
            feats.append(jnp.max(c, axis=0, keepdims=True))
        x2 = jax.nn.relu(jnp.concatenate(feats, axis=1) @ p['fc2w'] + p['fc2b'])
        x3 = jax.nn.relu(conf_x[b, 0] * p['fc3w'] + p['fc3b'])
        outs.append((x1 + x2 + x3) @ p['fcw'] + p['fcb'])
    return jnp.concatenate(outs, axis=0)


if __name__ == "__main__":
    B, H, W, E = 2, 16, 8, 32   # batch, para_h, para_w, embedding_size

    key = jax.random.PRNGKey(0)
    k_t, k_s, k_c, k_p = jax.random.split(key, 4)
    trellis_x = jax.random.normal(k_t, (B, H, W), dtype=jnp.float32)
    seq_x = jax.random.normal(k_s, (B, H, E), dtype=jnp.float32)
    conf_x = jax.random.uniform(k_c, (B, 1), dtype=jnp.float32)
    params = make_params(k_p, H, W, E)

    out = jax.block_until_ready(pal_forward(trellis_x, seq_x, conf_x, params))
    assert out.shape == (B, 1)

    # bf16 MXU path vs f32 reference -> relaxed tolerance.
    ref = pal_reference(trellis_x, seq_x, conf_x, params)
    np.testing.assert_allclose(np.asarray(out), np.asarray(ref), rtol=2e-2, atol=2e-2)

    print("KERNEL_OK")
</pallas_src>

<mosaic_0001>
module attributes {stable_mosaic.version = 11 : i64} {
  func.func @pal_kernel(%arg0: i32, %arg1: memref<8x128xbf16, #tpu.memory_space<vmem>>, %arg2: memref<8x20x32xbf16, #tpu.memory_space<vmem>>, %arg3: memref<8x1xf32, #tpu.memory_space<vmem>>, %arg4: memref<128x256xbf16, #tpu.memory_space<vmem>>, %arg5: memref<1x256xf32, #tpu.memory_space<vmem>>, %arg6: memref<160x384xbf16, #tpu.memory_space<vmem>>, %arg7: memref<1x384xf32, #tpu.memory_space<vmem>>, %arg8: memref<16x384xf32, #tpu.memory_space<vmem>>, %arg9: memref<384x256xbf16, #tpu.memory_space<vmem>>, %arg10: memref<1x256xf32, #tpu.memory_space<vmem>>, %arg11: memref<1x256xf32, #tpu.memory_space<vmem>>, %arg12: memref<1x256xf32, #tpu.memory_space<vmem>>, %arg13: memref<256x128xbf16, #tpu.memory_space<vmem>>, %arg14: memref<1x128xf32, #tpu.memory_space<vmem>>, %arg15: memref<8x128xf32, #tpu.memory_space<vmem>>) attributes {dimension_semantics = [#tpu.dimension_semantics<parallel>], iteration_bounds = array<i64: 1>, scalar_prefetch = 0 : i64, scratch_operands = 0 : i64, tpu.core_type = #tpu.core_type<tc>, window_params = [{transform_indices = @transform_0, window_bounds = array<i64: 8, 128>}, {transform_indices = @transform_1, window_bounds = array<i64: 8, 20, 32>}, {transform_indices = @transform_2, window_bounds = array<i64: 8, 1>}, {pipeline_mode = #tpu.pipeline_mode<synchronous>, transform_indices = @transform_3, window_bounds = array<i64: 128, 256>}, {pipeline_mode = #tpu.pipeline_mode<synchronous>, transform_indices = @transform_4, window_bounds = array<i64: 1, 256>}, {pipeline_mode = #tpu.pipeline_mode<synchronous>, transform_indices = @transform_5, window_bounds = array<i64: 160, 384>}, {pipeline_mode = #tpu.pipeline_mode<synchronous>, transform_indices = @transform_6, window_bounds = array<i64: 1, 384>}, {pipeline_mode = #tpu.pipeline_mode<synchronous>, transform_indices = @transform_7, window_bounds = array<i64: 16, 384>}, {pipeline_mode = #tpu.pipeline_mode<synchronous>, transform_indices = @transform_8, window_bounds = array<i64: 384, 256>}, {pipeline_mode = #tpu.pipeline_mode<synchronous>, transform_indices = @transform_9, window_bounds = array<i64: 1, 256>}, {pipeline_mode = #tpu.pipeline_mode<synchronous>, transform_indices = @transform_10, window_bounds = array<i64: 1, 256>}, {pipeline_mode = #tpu.pipeline_mode<synchronous>, transform_indices = @transform_11, window_bounds = array<i64: 1, 256>}, {pipeline_mode = #tpu.pipeline_mode<synchronous>, transform_indices = @transform_12, window_bounds = array<i64: 256, 128>}, {pipeline_mode = #tpu.pipeline_mode<synchronous>, transform_indices = @transform_13, window_bounds = array<i64: 1, 128>}, {transform_indices = @transform_14, window_bounds = array<i64: 8, 128>}]} {
    %c0 = arith.constant 0 : index
    %c0_0 = arith.constant 0 : index
    %0 = vector.load %arg1[%c0, %c0_0] : memref<8x128xbf16, #tpu.memory_space<vmem>>, vector<8x128xbf16>
    %c0_1 = arith.constant 0 : index
    %c0_2 = arith.constant 0 : index
    %1 = vector.load %arg4[%c0_1, %c0_2] : memref<128x256xbf16, #tpu.memory_space<vmem>>, vector<128x256xbf16>
    %cst = arith.constant dense<0.000000e+00> : vector<8x256xf32>
    %2 = tpu.matmul %0, %1, %cst {dimension_numbers = #tpu.dot_dimension_numbers<[1], [0], [0], [1], [0, 0, 1, 1], [], []>} : vector<8x128xbf16>, vector<128x256xbf16>, vector<8x256xf32> -> vector<8x256xf32>
    %c0_3 = arith.constant 0 : index
    %c0_4 = arith.constant 0 : index
    %3 = vector.load %arg5[%c0_3, %c0_4] : memref<1x256xf32, #tpu.memory_space<vmem>>, vector<1x256xf32>
    %4 = vector.broadcast %3 : vector<1x256xf32> to vector<8x256xf32>
    %5 = arith.addf %2, %4 : vector<8x256xf32>
    %cst_5 = arith.constant 0.000000e+00 : f32
    %6 = vector.broadcast %cst_5 : f32 to vector<8x256xf32>
    %7 = arith.maximumf %5, %6 : vector<8x256xf32>
    %c0_6 = arith.constant 0 : index
    %c0_7 = arith.constant 0 : index
    %c0_8 = arith.constant 0 : index
    %8 = vector.load %arg2[%c0_6, %c0_7, %c0_8] : memref<8x20x32xbf16, #tpu.memory_space<vmem>>, vector<8x20x32xbf16>
    %9 = vector.extract_strided_slice %8 {offsets = [0, 0, 0], sizes = [8, 16, 32], strides = [1, 1, 1]} : vector<8x20x32xbf16> to vector<8x16x32xbf16>
    %10 = vector.extract_strided_slice %8 {offsets = [0, 1, 0], sizes = [8, 16, 32], strides = [1, 1, 1]} : vector<8x20x32xbf16> to vector<8x16x32xbf16>
    %11 = vector.extract_strided_slice %8 {offsets = [0, 2, 0], sizes = [8, 16, 32], strides = [1, 1, 1]} : vector<8x20x32xbf16> to vector<8x16x32xbf16>
    %12 = vector.extract_strided_slice %8 {offsets = [0, 3, 0], sizes = [8, 16, 32], strides = [1, 1, 1]} : vector<8x20x32xbf16> to vector<8x16x32xbf16>
    %13 = vector.extract_strided_slice %8 {offsets = [0, 4, 0], sizes = [8, 16, 32], strides = [1, 1, 1]} : vector<8x20x32xbf16> to vector<8x16x32xbf16>
    %14 = tpu.concatenate %9, %10, %11, %12, %13 in 2 : vector<8x16x32xbf16>, vector<8x16x32xbf16>, vector<8x16x32xbf16>, vector<8x16x32xbf16>, vector<8x16x32xbf16> -> vector<8x16x160xbf16>
    %15 = vector.shape_cast %14 : vector<8x16x160xbf16> to vector<128x160xbf16>
    %c0_9 = arith.constant 0 : index
    %c0_10 = arith.constant 0 : index
    %16 = vector.load %arg6[%c0_9, %c0_10] : memref<160x384xbf16, #tpu.memory_space<vmem>>, vector<160x384xbf16>
    %cst_11 = arith.constant dense<0.000000e+00> : vector<128x384xf32>
    %17 = tpu.matmul %15, %16, %cst_11 {dimension_numbers = #tpu.dot_dimension_numbers<[1], [0], [0], [1], [0, 0, 1, 1], [], []>} : vector<128x160xbf16>, vector<160x384xbf16>, vector<128x384xf32> -> vector<128x384xf32>
    %18 = vector.shape_cast %17 : vector<128x384xf32> to vector<8x16x384xf32>
    %c0_12 = arith.constant 0 : index
    %c0_13 = arith.constant 0 : index
    %19 = vector.load %arg7[%c0_12, %c0_13] : memref<1x384xf32, #tpu.memory_space<vmem>>, vector<1x384xf32>
    %20 = vector.shape_cast %19 : vector<1x384xf32> to vector<1x1x384xf32>
    %21 = vector.broadcast %20 : vector<1x1x384xf32> to vector<8x16x384xf32>
    %22 = arith.addf %18, %21 : vector<8x16x384xf32>
    %cst_14 = arith.constant 0.000000e+00 : f32
    %23 = vector.broadcast %cst_14 : f32 to vector<8x16x384xf32>
    %24 = arith.maximumf %22, %23 : vector<8x16x384xf32>
    %c0_15 = arith.constant 0 : index
    %c0_16 = arith.constant 0 : index
    %25 = vector.load %arg8[%c0_15, %c0_16] : memref<16x384xf32, #tpu.memory_space<vmem>>, vector<16x384xf32>
    %26 = vector.shape_cast %25 : vector<16x384xf32> to vector<1x16x384xf32>
    %27 = vector.broadcast %26 : vector<1x16x384xf32> to vector<8x16x384xf32>
    %28 = arith.mulf %24, %27 : vector<8x16x384xf32>
    %cst_17 = arith.constant dense<0xFF800000> : vector<8x384xf32>
    %29 = vector.multi_reduction <maximumf>, %28, %cst_17 [1] : vector<8x16x384xf32> to vector<8x384xf32>
    %30 = arith.truncf %29 : vector<8x384xf32> to vector<8x384xbf16>
    %c0_18 = arith.constant 0 : index
    %c0_19 = arith.constant 0 : index
    %31 = vector.load %arg9[%c0_18, %c0_19] : memref<384x256xbf16, #tpu.memory_space<vmem>>, vector<384x256xbf16>
    %cst_20 = arith.constant dense<0.000000e+00> : vector<8x256xf32>
    %32 = tpu.matmul %30, %31, %cst_20 {dimension_numbers = #tpu.dot_dimension_numbers<[1], [0], [0], [1], [0, 0, 1, 1], [], []>} : vector<8x384xbf16>, vector<384x256xbf16>, vector<8x256xf32> -> vector<8x256xf32>
    %c0_21 = arith.constant 0 : index
    %c0_22 = arith.constant 0 : index
    %33 = vector.load %arg10[%c0_21, %c0_22] : memref<1x256xf32, #tpu.memory_space<vmem>>, vector<1x256xf32>
    %34 = vector.broadcast %33 : vector<1x256xf32> to vector<8x256xf32>
    %35 = arith.addf %32, %34 : vector<8x256xf32>
    %cst_23 = arith.constant 0.000000e+00 : f32
    %36 = vector.broadcast %cst_23 : f32 to vector<8x256xf32>
    %37 = arith.maximumf %35, %36 : vector<8x256xf32>
    %c0_24 = arith.constant 0 : index
    %c0_25 = arith.constant 0 : index
    %38 = vector.load %arg3[%c0_24, %c0_25] : memref<8x1xf32, #tpu.memory_space<vmem>>, vector<8x1xf32>
    %c0_26 = arith.constant 0 : index
    %c0_27 = arith.constant 0 : index
    %39 = vector.load %arg11[%c0_26, %c0_27] : memref<1x256xf32, #tpu.memory_space<vmem>>, vector<1x256xf32>
    %40 = vector.broadcast %38 : vector<8x1xf32> to vector<8x256xf32>
    %41 = vector.broadcast %39 : vector<1x256xf32> to vector<8x256xf32>
    %42 = arith.mulf %40, %41 : vector<8x256xf32>
    %c0_28 = arith.constant 0 : index
    %c0_29 = arith.constant 0 : index
    %43 = vector.load %arg12[%c0_28, %c0_29] : memref<1x256xf32, #tpu.memory_space<vmem>>, vector<1x256xf32>
    %44 = vector.broadcast %43 : vector<1x256xf32> to vector<8x256xf32>
    %45 = arith.addf %42, %44 : vector<8x256xf32>
    %cst_30 = arith.constant 0.000000e+00 : f32
    %46 = vector.broadcast %cst_30 : f32 to vector<8x256xf32>
    %47 = arith.maximumf %45, %46 : vector<8x256xf32>
    %48 = arith.addf %7, %37 : vector<8x256xf32>
    %49 = arith.addf %48, %47 : vector<8x256xf32>
    %50 = arith.truncf %49 : vector<8x256xf32> to vector<8x256xbf16>
    %c0_31 = arith.constant 0 : index
    %c0_32 = arith.constant 0 : index
    %51 = vector.load %arg13[%c0_31, %c0_32] : memref<256x128xbf16, #tpu.memory_space<vmem>>, vector<256x128xbf16>
    %cst_33 = arith.constant dense<0.000000e+00> : vector<8x128xf32>
    %52 = tpu.matmul %50, %51, %cst_33 {dimension_numbers = #tpu.dot_dimension_numbers<[1], [0], [0], [1], [0, 0, 1, 1], [], []>} : vector<8x256xbf16>, vector<256x128xbf16>, vector<8x128xf32> -> vector<8x128xf32>
    %c0_34 = arith.constant 0 : index
    %c0_35 = arith.constant 0 : index
    %53 = vector.load %arg14[%c0_34, %c0_35] : memref<1x128xf32, #tpu.memory_space<vmem>>, vector<1x128xf32>
    %54 = vector.broadcast %53 : vector<1x128xf32> to vector<8x128xf32>
    %55 = arith.addf %52, %54 : vector<8x128xf32>
    %c0_36 = arith.constant 0 : index
    %c0_37 = arith.constant 0 : index
    %56 = vector.load %arg15[%c0_36, %c0_37] : memref<8x128xf32, #tpu.memory_space<vmem>>, vector<8x128xf32>
    tpu.vector_store %arg15[%c0_36, %c0_37], %55 {strides = array<i32>} : memref<8x128xf32, #tpu.memory_space<vmem>>, vector<8x128xf32>,
    return
  }
  func.func @transform_0(%arg0: i32) -> (i32, i32) {
    %c0_i32 = arith.constant 0 : i32
    %c0_i32_0 = arith.constant 0 : i32
    return %arg0, %c0_i32 : i32, i32
  }
  func.func @transform_1(%arg0: i32) -> (i32, i32, i32) {
    %c0_i32 = arith.constant 0 : i32
    %c0_i32_0 = arith.constant 0 : i32
    %c0_i32_1 = arith.constant 0 : i32
    return %arg0, %c0_i32, %c0_i32_0 : i32, i32, i32
  }
  func.func @transform_2(%arg0: i32) -> (i32, i32) {
    %c0_i32 = arith.constant 0 : i32
    %c0_i32_0 = arith.constant 0 : i32
    return %arg0, %c0_i32 : i32, i32
  }
  func.func @transform_3(%arg0: i32) -> (i32, i32) {
    %c0_i32 = arith.constant 0 : i32
    %c0_i32_0 = arith.constant 0 : i32
    %c0_i32_1 = arith.constant 0 : i32
    return %c0_i32, %c0_i32_0 : i32, i32
  }
  func.func @transform_4(%arg0: i32) -> (i32, i32) {
    %c0_i32 = arith.constant 0 : i32
    %c0_i32_0 = arith.constant 0 : i32
    %c0_i32_1 = arith.constant 0 : i32
    return %c0_i32, %c0_i32_0 : i32, i32
  }
  func.func @transform_5(%arg0: i32) -> (i32, i32) {
    %c0_i32 = arith.constant 0 : i32
    %c0_i32_0 = arith.constant 0 : i32
    %c0_i32_1 = arith.constant 0 : i32
    return %c0_i32, %c0_i32_0 : i32, i32
  }
  func.func @transform_6(%arg0: i32) -> (i32, i32) {
    %c0_i32 = arith.constant 0 : i32
    %c0_i32_0 = arith.constant 0 : i32
    %c0_i32_1 = arith.constant 0 : i32
    return %c0_i32, %c0_i32_0 : i32, i32
  }
  func.func @transform_7(%arg0: i32) -> (i32, i32) {
    %c0_i32 = arith.constant 0 : i32
    %c0_i32_0 = arith.constant 0 : i32
    %c0_i32_1 = arith.constant 0 : i32
    return %c0_i32, %c0_i32_0 : i32, i32
  }
  func.func @transform_8(%arg0: i32) -> (i32, i32) {
    %c0_i32 = arith.constant 0 : i32
    %c0_i32_0 = arith.constant 0 : i32
    %c0_i32_1 = arith.constant 0 : i32
    return %c0_i32, %c0_i32_0 : i32, i32
  }
  func.func @transform_9(%arg0: i32) -> (i32, i32) {
    %c0_i32 = arith.constant 0 : i32
    %c0_i32_0 = arith.constant 0 : i32
    %c0_i32_1 = arith.constant 0 : i32
    return %c0_i32, %c0_i32_0 : i32, i32
  }
  func.func @transform_10(%arg0: i32) -> (i32, i32) {
    %c0_i32 = arith.constant 0 : i32
    %c0_i32_0 = arith.constant 0 : i32
    %c0_i32_1 = arith.constant 0 : i32
    return %c0_i32, %c0_i32_0 : i32, i32
  }
  func.func @transform_11(%arg0: i32) -> (i32, i32) {
    %c0_i32 = arith.constant 0 : i32
    %c0_i32_0 = arith.constant 0 : i32
    %c0_i32_1 = arith.constant 0 : i32
    return %c0_i32, %c0_i32_0 : i32, i32
  }
  func.func @transform_12(%arg0: i32) -> (i32, i32) {
    %c0_i32 = arith.constant 0 : i32
    %c0_i32_0 = arith.constant 0 : i32
    %c0_i32_1 = arith.constant 0 : i32
    return %c0_i32, %c0_i32_0 : i32, i32
  }
  func.func @transform_13(%arg0: i32) -> (i32, i32) {
    %c0_i32 = arith.constant 0 : i32
    %c0_i32_0 = arith.constant 0 : i32
    %c0_i32_1 = arith.constant 0 : i32
    return %c0_i32, %c0_i32_0 : i32, i32
  }
  func.func @transform_14(%arg0: i32) -> (i32, i32) {
    %c0_i32 = arith.constant 0 : i32
    %c0_i32_0 = arith.constant 0 : i32
    return %arg0, %c0_i32 : i32, i32
  }
}

</mosaic_0001>

<llo_original>
// kernel: pal_forward.1
$region0: #{pal_forward.1}
  #allocation0 [shape = 'u32[]', space=smem, size = 0x4, offset = 0x4, fixed_abs, tag = 'smem constant byte address 0x4 - core index']
  #allocation1 [shape = 'u32[72,128]{1,0:T(1,128)}', space=vmem, size = 0x9000, scoped, tag = 'internal scratch']
  %s0 = inlined_call_operand.vmem [shape: bf16[8,128], index: 0, kind: input, shape index: {}]
  %s1 = inlined_call_operand.vmem [shape: bf16[8,20,32], index: 1, kind: input, shape index: {}]
  %s2 = inlined_call_operand.vmem [shape: f32[8,1], index: 2, kind: input, shape index: {}]
  %s3 = inlined_call_operand.vmem [shape: bf16[128,256], index: 3, kind: input, shape index: {}]
  %s4 = inlined_call_operand.vmem [shape: f32[1,256], index: 4, kind: input, shape index: {}]
  %s5 = inlined_call_operand.vmem [shape: bf16[160,384], index: 5, kind: input, shape index: {}]
  %s6 = inlined_call_operand.vmem [shape: f32[1,384], index: 6, kind: input, shape index: {}]
  %s7 = inlined_call_operand.vmem [shape: f32[16,384], index: 7, kind: input, shape index: {}]
  %s8 = inlined_call_operand.vmem [shape: bf16[384,256], index: 8, kind: input, shape index: {}]
  %s9 = inlined_call_operand.vmem [shape: f32[1,256], index: 9, kind: input, shape index: {}]
  %s10 = inlined_call_operand.vmem [shape: f32[1,256], index: 10, kind: input, shape index: {}]
  %s11 = inlined_call_operand.vmem [shape: f32[1,256], index: 11, kind: input, shape index: {}]
  %s12 = inlined_call_operand.vmem [shape: bf16[256,128], index: 12, kind: input, shape index: {}]
  %s13 = inlined_call_operand.vmem [shape: f32[1,128], index: 13, kind: input, shape index: {}]
  %s14 = inlined_call_operand.vmem [shape: f32[8,128], index: 14, kind: output, shape index: {}]
  %s15 = sld [smem:[#allocation0]]
  $region66: #{pal_forward.1} parent=0
    _
  %s17 = ssub.s32 1, %s15
  %s18 = scalar_select 0, %s17, %s15
  // Predicated region
  $region2: #{pal_forward.1} parent=0 // pred_check
    _
  $region3: #{pal_forward.1} parent=0 // pred_check_branch
    %20 = sbr.rel (0) target = $region5
  $region4: #{pal_forward.1} parent=0 // pred_region
    _
  $region5: #{pal_forward.1} parent=0 // pred_fallthru
    _
  // Predicated region
  $region6: #{pal_forward.1} parent=0 // pred_check
    _
  $region7: #{pal_forward.1} parent=0 // pred_check_branch
    %22 = sbr.rel (0) target = $region9
  $region8: #{pal_forward.1} parent=0 // pred_region
    _
  $region9: #{pal_forward.1} parent=0 // pred_fallthru
    _
  // Predicated region
  $region10: #{pal_forward.1} parent=0 // pred_check
    _
  $region11: #{pal_forward.1} parent=0 // pred_check_branch
    %24 = sbr.rel (0) target = $region13
  $region12: #{pal_forward.1} parent=0 // pred_region
    _
  $region13: #{pal_forward.1} parent=0 // pred_fallthru
    _
  // Predicated region
  $region14: #{pal_forward.1} parent=0 // pred_check
    _
  $region15: #{pal_forward.1} parent=0 // pred_check_branch
    %26 = sbr.rel (0) target = $region17
  $region16: #{pal_forward.1} parent=0 // pred_region
    _
  $region17: #{pal_forward.1} parent=0 // pred_fallthru
    _
  // Predicated region
  $region18: #{pal_forward.1} parent=0 // pred_check
    _
  $region19: #{pal_forward.1} parent=0 // pred_check_branch
    %28 = sbr.rel (0) target = $region21
  $region20: #{pal_forward.1} parent=0 // pred_region
    _
  $region21: #{pal_forward.1} parent=0 // pred_fallthru
    _
  // Predicated region
  $region22: #{pal_forward.1} parent=0 // pred_check
    _
  $region23: #{pal_forward.1} parent=0 // pred_check_branch
    %30 = sbr.rel (0) target = $region25
  $region24: #{pal_forward.1} parent=0 // pred_region
    _
  $region25: #{pal_forward.1} parent=0 // pred_fallthru
    _
  // Predicated region
  $region26: #{pal_forward.1} parent=0 // pred_check
    _
  $region27: #{pal_forward.1} parent=0 // pred_check_branch
    %32 = sbr.rel (0) target = $region29
  $region28: #{pal_forward.1} parent=0 // pred_region
    _
  $region29: #{pal_forward.1} parent=0 // pred_fallthru
    _
  // Predicated region
  $region30: #{pal_forward.1} parent=0 // pred_check
    _
  $region31: #{pal_forward.1} parent=0 // pred_check_branch
    %34 = sbr.rel (0) target = $region33
  $region32: #{pal_forward.1} parent=0 // pred_region
    _
  $region33: #{pal_forward.1} parent=0 // pred_fallthru
    _
  // Predicated region
  $region34: #{pal_forward.1} parent=0 // pred_check
    _
  $region35: #{pal_forward.1} parent=0 // pred_check_branch
    %36 = sbr.rel (0) target = $region37
  $region36: #{pal_forward.1} parent=0 // pred_region
    _
  $region37: #{pal_forward.1} parent=0 // pred_fallthru
    _
  // Predicated region
  $region38: #{pal_forward.1} parent=0 // pred_check
    _
  $region39: #{pal_forward.1} parent=0 // pred_check_branch
    %38 = sbr.rel (0) target = $region41
  $region40: #{pal_forward.1} parent=0 // pred_region
    _
  $region41: #{pal_forward.1} parent=0 // pred_fallthru
    _
  // Predicated region
  $region42: #{pal_forward.1} parent=0 // pred_check
    _
  $region43: #{pal_forward.1} parent=0 // pred_check_branch
    %40 = sbr.rel (0) target = $region45
  $region44: #{pal_forward.1} parent=0 // pred_region
    _
  $region45: #{pal_forward.1} parent=0 // pred_fallthru
    _
  // Predicated region
  $region46: #{pal_forward.1} parent=0 // pred_check
    _
  $region47: #{pal_forward.1} parent=0 // pred_check_branch
    %42 = sbr.rel (0) target = $region49
  $region48: #{pal_forward.1} parent=0 // pred_region
    _
  $region49: #{pal_forward.1} parent=0 // pred_fallthru
    _
  // Predicated region
  $region50: #{pal_forward.1} parent=0 // pred_check
    _
  $region51: #{pal_forward.1} parent=0 // pred_check_branch
    %44 = sbr.rel (0) target = $region53
  $region52: #{pal_forward.1} parent=0 // pred_region
    _
  $region53: #{pal_forward.1} parent=0 // pred_fallthru
    _
  // Predicated region
  $region54: #{pal_forward.1} parent=0 // pred_check
    _
  $region55: #{pal_forward.1} parent=0 // pred_check_branch
    %46 = sbr.rel (0) target = $region57
  $region56: #{pal_forward.1} parent=0 // pred_region
    _
  $region57: #{pal_forward.1} parent=0 // pred_fallthru
    _
  %v48 = vld [vmem:[%s0] sm:$0xf]
  %v49 = vld [vmem:[%s3] sm:$0xff]
  %v50 = vld [vmem:[%s3 + $0x8] sm:$0xff]
  %v51 = vld [vmem:[%s3 + $0x10] sm:$0xff]
  %v52 = vld [vmem:[%s3 + $0x18] sm:$0xff]
  %v53 = vld [vmem:[%s3 + $0x20] sm:$0xff]
  %v54 = vld [vmem:[%s3 + $0x28] sm:$0xff]
  %v55 = vld [vmem:[%s3 + $0x30] sm:$0xff]
  %v56 = vld [vmem:[%s3 + $0x38] sm:$0xff]
  %v57 = vld [vmem:[%s3 + $0x40] sm:$0xff]
  %v58 = vld [vmem:[%s3 + $0x48] sm:$0xff]
  %v59 = vld [vmem:[%s3 + $0x50] sm:$0xff]
  %v60 = vld [vmem:[%s3 + $0x58] sm:$0xff]
  %v61 = vld [vmem:[%s3 + $0x60] sm:$0xff]
  %v62 = vld [vmem:[%s3 + $0x68] sm:$0xff]
  %v63 = vld [vmem:[%s3 + $0x70] sm:$0xff]
  %v64 = vld [vmem:[%s3 + $0x78] sm:$0xff]
  %v65 = vld [vmem:[%s4] sm:$0x3]
  %v67 = vperm.slane %v65, 0
  %v68 = vperm.slane %v65, 1
  %v87 = vunpack.c.l.b16 %v49
  %v88 = vunpack.c.h.b16 %v49
  %v89 = vunpack.c.l.b16 %v50
  %v90 = vunpack.c.h.b16 %v50
  %v91 = vunpack.c.l.b16 %v51
  %v92 = vunpack.c.h.b16 %v51
  %v93 = vunpack.c.l.b16 %v52
  %v94 = vunpack.c.h.b16 %v52
  %v95 = vunpack.c.l.b16 %v53
  %v96 = vunpack.c.h.b16 %v53
  %v97 = vunpack.c.l.b16 %v54
  %v98 = vunpack.c.h.b16 %v54
  %v99 = vunpack.c.l.b16 %v55
  %v100 = vunpack.c.h.b16 %v55
  %v101 = vunpack.c.l.b16 %v56
  %v102 = vunpack.c.h.b16 %v56
  %v103 = vunpack.c.l.b16 %v57
  %v104 = vunpack.c.h.b16 %v57
  %v105 = vunpack.c.l.b16 %v58
  %v106 = vunpack.c.h.b16 %v58
  %v107 = vunpack.c.l.b16 %v59
  %v108 = vunpack.c.h.b16 %v59
  %v109 = vunpack.c.l.b16 %v60
  %v110 = vunpack.c.h.b16 %v60
  %v111 = vunpack.c.l.b16 %v61
  %v112 = vunpack.c.h.b16 %v61
  %v113 = vunpack.c.l.b16 %v62
  %v114 = vunpack.c.h.b16 %v62
  %v115 = vunpack.c.l.b16 %v63
  %v116 = vunpack.c.h.b16 %v63
  %v117 = vunpack.c.l.b16 %v64
  %v118 = vunpack.c.h.b16 %v64
  %v119 = vpack.c.b16 %v89, %v87
  %v120 = vpack.c.b16 %v90, %v88
  %v121 = vpack.c.b16 %v93, %v91
  %v122 = vpack.c.b16 %v94, %v92
  %v123 = vpack.c.b16 %v97, %v95
  %v124 = vpack.c.b16 %v98, %v96
  %v125 = vpack.c.b16 %v101, %v99
  %v126 = vpack.c.b16 %v102, %v100
  %v127 = vpack.c.b16 %v105, %v103
  %v128 = vpack.c.b16 %v106, %v104
  %v129 = vpack.c.b16 %v109, %v107
  %v130 = vpack.c.b16 %v110, %v108
  %v131 = vpack.c.b16 %v113, %v111
  %v132 = vpack.c.b16 %v114, %v112
  %v133 = vpack.c.b16 %v117, %v115
  %v134 = vpack.c.b16 %v118, %v116
  %151 = vmatpush.bf16.msra.mxu0 %v133
  %152 = vmatpush.bf16.msra.mxu0 %v131
  %153 = vmatpush.bf16.msra.mxu0 %v129
  %154 = vmatpush.bf16.msra.mxu0 %v127
  %155 = vmatpush.bf16.msra.mxu0 %v125
  %156 = vmatpush.bf16.msra.mxu0 %v123
  %157 = vmatpush.bf16.msra.mxu0 %v121
  %158 = vmatpush.bf16.msra.mxu0 %v119
  %159 = vmatmul.bf16.gmra.mxu0 %v48
  %v160 = vpop.f32.mrf.mxu0
  %v161 = vadd.f32 %v67, %v160
  %v162 = vpop.f32.mrf.mxu0
  %163 = vdwg.mxu0
  %164 = vmatpush.bf16.msra.mxu0 %v134
  %165 = vmatpush.bf16.msra.mxu0 %v132
  %166 = vmatpush.bf16.msra.mxu0 %v130
  %167 = vmatpush.bf16.msra.mxu0 %v128
  %168 = vmatpush.bf16.msra.mxu0 %v126
  %169 = vmatpush.bf16.msra.mxu0 %v124
  %170 = vmatpush.bf16.msra.mxu0 %v122
  %171 = vmatpush.bf16.msra.mxu0 %v120
  %172 = vmatmul.bf16.gmra.mxu0 %v48
  %v173 = vpop.f32.mrf.mxu0
  %v174 = vadd.f32 %v68, %v173
  %v175 = vpop.f32.mrf.mxu0
  %176 = vdwg.mxu0
  %v177 = vmax.f32 %v161, 0.0
  %v178 = vmax.f32 %v174, 0.0
  %v179 = vld [vmem:[%s1] sm:$0xf]
  %v180 = vld [vmem:[%s1 + $0x4] sm:$0xf]
  %v181 = vld [vmem:[%s1 + $0x8] sm:$0x3]
  %v182 = vld [vmem:[%s1 + $0xc] sm:$0xf]
  %v183 = vld [vmem:[%s1 + $0x10] sm:$0xf]
  %v184 = vld [vmem:[%s1 + $0x14] sm:$0x3]
  %v185 = vld [vmem:[%s1 + $0x18] sm:$0xf]
  %v186 = vld [vmem:[%s1 + $0x1c] sm:$0xf]
  %v187 = vld [vmem:[%s1 + $0x20] sm:$0x3]
  %v188 = vld [vmem:[%s1 + $0x24] sm:$0xf]
  %v189 = vld [vmem:[%s1 + $0x28] sm:$0xf]
  %v190 = vld [vmem:[%s1 + $0x2c] sm:$0x3]
  %v191 = vld [vmem:[%s1 + $0x30] sm:$0xf]
  %v192 = vld [vmem:[%s1 + $0x34] sm:$0xf]
  %v193 = vld [vmem:[%s1 + $0x38] sm:$0x3]
  %v194 = vld [vmem:[%s1 + $0x3c] sm:$0xf]
  %v195 = vld [vmem:[%s1 + $0x40] sm:$0xf]
  %v196 = vld [vmem:[%s1 + $0x44] sm:$0x3]
  %v197 = vld [vmem:[%s1 + $0x48] sm:$0xf]
  %v198 = vld [vmem:[%s1 + $0x4c] sm:$0xf]
  %v199 = vld [vmem:[%s1 + $0x50] sm:$0x3]
  %v200 = vld [vmem:[%s1 + $0x54] sm:$0xf]
  %v201 = vld [vmem:[%s1 + $0x58] sm:$0xf]
  %v202 = vld [vmem:[%s1 + $0x5c] sm:$0x3]
  %v219 = vunpack.c.l.b16 %v179
  %v220 = vunpack.c.l.b16 %v180
  %v221 = vunpack.c.l.b16 %v182
  %v222 = vunpack.c.l.b16 %v183
  %v223 = vunpack.c.l.b16 %v185
  %v224 = vunpack.c.l.b16 %v186
  %v225 = vunpack.c.l.b16 %v188
  %v226 = vunpack.c.l.b16 %v189
  %v227 = vunpack.c.l.b16 %v191
  %v228 = vunpack.c.l.b16 %v192
  %v229 = vunpack.c.l.b16 %v194
  %v230 = vunpack.c.l.b16 %v195
  %v231 = vunpack.c.l.b16 %v197
  %v232 = vunpack.c.l.b16 %v198
  %v233 = vunpack.c.l.b16 %v200
  %v234 = vunpack.c.l.b16 %v201
  %v235 = vpack.c.b16 %v220, %v219
  %v236 = vpack.c.b16 %v222, %v221
  %v237 = vpack.c.b16 %v224, %v223
  %v238 = vpack.c.b16 %v226, %v225
  %v239 = vpack.c.b16 %v228, %v227
  %v240 = vpack.c.b16 %v230, %v229
  %v241 = vpack.c.b16 %v232, %v231
  %v242 = vpack.c.b16 %v234, %v233
  %v251 = vunpack.c.l.b16 %v181
  %v252 = vunpack.c.l.b16 %v184
  %v253 = vunpack.c.l.b16 %v187
  %v254 = vunpack.c.l.b16 %v190
  %v255 = vunpack.c.l.b16 %v193
  %v256 = vunpack.c.l.b16 %v196
  %v257 = vunpack.c.l.b16 %v199
  %v258 = vunpack.c.l.b16 %v202
  %v259 = vpack.c.b16 %v251, %v251
  %v260 = vpack.c.b16 %v252, %v252
  %v261 = vpack.c.b16 %v253, %v253
  %v262 = vpack.c.b16 %v254, %v254
  %v263 = vpack.c.b16 %v255, %v255
  %v264 = vpack.c.b16 %v256, %v256
  %v265 = vpack.c.b16 %v257, %v257
  %v266 = vpack.c.b16 %v258, %v258
  %vm267 = vsmask.f32 7424
  %v269 = vshrl.u32 %v235, 16
  %v271 = vshll.u32 %v235, 16
  %v273 = vrot.slane %v271, 1
  %v274 = vor.u32 %v269, %v273
  %v276 = vshll.u32 %v259, 16
  %v278 = vrot.slane %v276, 1
  %v279 = vsel %vm267, %v274, %v278
  %v281 = vshrl.u32 %v236, 16
  %v283 = vshll.u32 %v236, 16
  %v285 = vrot.slane %v283, 1
  %v286 = vor.u32 %v281, %v285
  %v288 = vshll.u32 %v260, 16
  %v290 = vrot.slane %v288, 1
  %v291 = vsel %vm267, %v286, %v290
  %v293 = vshrl.u32 %v237, 16
  %v295 = vshll.u32 %v237, 16
  %v297 = vrot.slane %v295, 1
  %v298 = vor.u32 %v293, %v297
  %v300 = vshll.u32 %v261, 16
  %v302 = vrot.slane %v300, 1
  %v303 = vsel %vm267, %v298, %v302
  %v305 = vshrl.u32 %v238, 16
  %v307 = vshll.u32 %v238, 16
  %v309 = vrot.slane %v307, 1
  %v310 = vor.u32 %v305, %v309
  %v312 = vshll.u32 %v262, 16
  %v314 = vrot.slane %v312, 1
  %v315 = vsel %vm267, %v310, %v314
  %v317 = vshrl.u32 %v239, 16
  %v319 = vshll.u32 %v239, 16
  %v321 = vrot.slane %v319, 1
  %v322 = vor.u32 %v317, %v321
  %v324 = vshll.u32 %v263, 16
  %v326 = vrot.slane %v324, 1
  %v327 = vsel %vm267, %v322, %v326
  %v329 = vshrl.u32 %v240, 16
  %v331 = vshll.u32 %v240, 16
  %v333 = vrot.slane %v331, 1
  %v334 = vor.u32 %v329, %v333
  %v336 = vshll.u32 %v264, 16
  %v338 = vrot.slane %v336, 1
  %v339 = vsel %vm267, %v334, %v338
  %v341 = vshrl.u32 %v241, 16
  %v343 = vshll.u32 %v241, 16
  %v345 = vrot.slane %v343, 1
  %v346 = vor.u32 %v341, %v345
  %v348 = vshll.u32 %v265, 16
  %v350 = vrot.slane %v348, 1
  %v351 = vsel %vm267, %v346, %v350
  %v353 = vshrl.u32 %v242, 16
  %v355 = vshll.u32 %v242, 16
  %v357 = vrot.slane %v355, 1
  %v358 = vor.u32 %v353, %v357
  %v360 = vshll.u32 %v266, 16
  %v362 = vrot.slane %v360, 1
  %v363 = vsel %vm267, %v358, %v362
  %364 = vrot.lane.b32.xlu0 %v279, 32
  %v365 = vpop.permute.xlu0 %364
  %366 = vrot.lane.b32.xlu0 %v291, 32
  %v367 = vpop.permute.xlu0 %366
  %368 = vrot.lane.b32.xlu0 %v303, 32
  %v369 = vpop.permute.xlu0 %368
  %370 = vrot.lane.b32.xlu0 %v315, 32
  %v371 = vpop.permute.xlu0 %370
  %372 = vrot.lane.b32.xlu0 %v327, 32
  %v373 = vpop.permute.xlu0 %372
  %374 = vrot.lane.b32.xlu0 %v339, 32
  %v375 = vpop.permute.xlu0 %374
  %376 = vrot.lane.b32.xlu0 %v351, 32
  %v377 = vpop.permute.xlu0 %376
  %378 = vrot.lane.b32.xlu0 %v363, 32
  %v379 = vpop.permute.xlu0 %378
  %vm380 = vcmask 1046528
  %v381 = vrot.slane %v235, 1
  %v382 = vrot.slane %v259, 1
  %v383 = vsel %vm380, %v381, %v382
  %v384 = vrot.slane %v236, 1
  %v385 = vrot.slane %v260, 1
  %v386 = vsel %vm380, %v384, %v385
  %v387 = vrot.slane %v237, 1
  %v388 = vrot.slane %v261, 1
  %v389 = vsel %vm380, %v387, %v388
  %v390 = vrot.slane %v238, 1
  %v391 = vrot.slane %v262, 1
  %v392 = vsel %vm380, %v390, %v391
  %v393 = vrot.slane %v239, 1
  %v394 = vrot.slane %v263, 1
  %v395 = vsel %vm380, %v393, %v394
  %v396 = vrot.slane %v240, 1
  %v397 = vrot.slane %v264, 1
  %v398 = vsel %vm380, %v396, %v397
  %v399 = vrot.slane %v241, 1
  %v400 = vrot.slane %v265, 1
  %v401 = vsel %vm380, %v399, %v400
  %v402 = vrot.slane %v242, 1
  %v403 = vrot.slane %v266, 1
  %v404 = vsel %vm380, %v402, %v403
  %405 = vrot.lane.b32.xlu0 %v383, 64
  %v406 = vpop.permute.xlu0 %405
  %407 = vrot.lane.b32.xlu0 %v386, 64
  %v408 = vpop.permute.xlu0 %407
  %409 = vrot.lane.b32.xlu0 %v389, 64
  %v410 = vpop.permute.xlu0 %409
  %411 = vrot.lane.b32.xlu0 %v392, 64
  %v412 = vpop.permute.xlu0 %411
  %413 = vrot.lane.b32.xlu0 %v395, 64
  %v414 = vpop.permute.xlu0 %413
  %415 = vrot.lane.b32.xlu0 %v398, 64
  %v416 = vpop.permute.xlu0 %415
  %417 = vrot.lane.b32.xlu0 %v401, 64
  %v418 = vpop.permute.xlu0 %417
  %419 = vrot.lane.b32.xlu0 %v404, 64
  %v420 = vpop.permute.xlu0 %419
  %vm421 = vsmask.f32 6400
  %v422 = vrot.slane %v269, 1
  %v423 = vrot.slane %v271, 2
  %v424 = vor.u32 %v422, %v423
  %v425 = vshrl.u32 %v259, 16
  %v427 = vrot.slane %v425, 1
  %v428 = vrot.slane %v276, 2
  %v429 = vor.u32 %v427, %v428
  %v430 = vsel %vm421, %v424, %v429
  %v431 = vrot.slane %v281, 1
  %v432 = vrot.slane %v283, 2
  %v433 = vor.u32 %v431, %v432
  %v434 = vshrl.u32 %v260, 16
  %v436 = vrot.slane %v434, 1
  %v437 = vrot.slane %v288, 2
  %v438 = vor.u32 %v436, %v437
  %v439 = vsel %vm421, %v433, %v438
  %v440 = vrot.slane %v293, 1
  %v441 = vrot.slane %v295, 2
  %v442 = vor.u32 %v440, %v441
  %v443 = vshrl.u32 %v261, 16
  %v445 = vrot.slane %v443, 1
  %v446 = vrot.slane %v300, 2
  %v447 = vor.u32 %v445, %v446
  %v448 = vsel %vm421, %v442, %v447
  %v449 = vrot.slane %v305, 1
  %v450 = vrot.slane %v307, 2
  %v451 = vor.u32 %v449, %v450
  %v452 = vshrl.u32 %v262, 16
  %v454 = vrot.slane %v452, 1
  %v455 = vrot.slane %v312, 2
  %v456 = vor.u32 %v454, %v455
  %v457 = vsel %vm421, %v451, %v456
  %v458 = vrot.slane %v317, 1
  %v459 = vrot.slane %v319, 2
  %v460 = vor.u32 %v458, %v459
  %v461 = vshrl.u32 %v263, 16
  %v463 = vrot.slane %v461, 1
  %v464 = vrot.slane %v324, 2
  %v465 = vor.u32 %v463, %v464
  %v466 = vsel %vm421, %v460, %v465
  %v467 = vrot.slane %v329, 1
  %v468 = vrot.slane %v331, 2
  %v469 = vor.u32 %v467, %v468
  %v470 = vshrl.u32 %v264, 16
  %v472 = vrot.slane %v470, 1
  %v473 = vrot.slane %v336, 2
  %v474 = vor.u32 %v472, %v473
  %v475 = vsel %vm421, %v469, %v474
  %v476 = vrot.slane %v341, 1
  %v477 = vrot.slane %v343, 2
  %v478 = vor.u32 %v476, %v477
  %v479 = vshrl.u32 %v265, 16
  %v481 = vrot.slane %v479, 1
  %v482 = vrot.slane %v348, 2
  %v483 = vor.u32 %v481, %v482
  %v484 = vsel %vm421, %v478, %v483
  %v485 = vrot.slane %v353, 1
  %v486 = vrot.slane %v355, 2
  %v487 = vor.u32 %v485, %v486
  %v488 = vshrl.u32 %v266, 16
  %v490 = vrot.slane %v488, 1
  %v491 = vrot.slane %v360, 2
  %v492 = vor.u32 %v490, %v491
  %v493 = vsel %vm421, %v487, %v492
  %494 = vrot.lane.b32.xlu0 %v430, 96
  %v495 = vpop.permute.xlu0 %494
  %496 = vrot.lane.b32.xlu0 %v439, 96
  %v497 = vpop.permute.xlu0 %496
  %498 = vrot.lane.b32.xlu0 %v448, 96
  %v499 = vpop.permute.xlu0 %498
  %500 = vrot.lane.b32.xlu0 %v457, 96
  %v501 = vpop.permute.xlu0 %500
  %502 = vrot.lane.b32.xlu0 %v466, 96
  %v503 = vpop.permute.xlu0 %502
  %504 = vrot.lane.b32.xlu0 %v475, 96
  %v505 = vpop.permute.xlu0 %504
  %506 = vrot.lane.b32.xlu0 %v484, 96
  %v507 = vpop.permute.xlu0 %506
  %508 = vrot.lane.b32.xlu0 %v493, 96
  %v509 = vpop.permute.xlu0 %508
  %vm510 = vcmask 1045504
  %v511 = vrot.slane %v235, 2
  %v512 = vrot.slane %v259, 2
  %v513 = vsel %vm510, %v511, %v512
  %v514 = vrot.slane %v236, 2
  %v515 = vrot.slane %v260, 2
  %v516 = vsel %vm510, %v514, %v515
  %v517 = vrot.slane %v237, 2
  %v518 = vrot.slane %v261, 2
  %v519 = vsel %vm510, %v517, %v518
  %v520 = vrot.slane %v238, 2
  %v521 = vrot.slane %v262, 2
  %v522 = vsel %vm510, %v520, %v521
  %v523 = vrot.slane %v239, 2
  %v524 = vrot.slane %v263, 2
  %v525 = vsel %vm510, %v523, %v524
  %v526 = vrot.slane %v240, 2
  %v527 = vrot.slane %v264, 2
  %v528 = vsel %vm510, %v526, %v527
  %v529 = vrot.slane %v241, 2
  %v530 = vrot.slane %v265, 2
  %v531 = vsel %vm510, %v529, %v530
  %v532 = vrot.slane %v242, 2
  %v533 = vrot.slane %v266, 2
  %v534 = vsel %vm510, %v532, %v533
  %vm535 = vcmask 261120
  %v537 = vsel %vm535, %v235, %v365
  %v539 = vsel %vm535, %v236, %v367
  %v541 = vsel %vm535, %v237, %v369
  %v543 = vsel %vm535, %v238, %v371
  %v545 = vsel %vm535, %v239, %v373
  %v547 = vsel %vm535, %v240, %v375
  %v549 = vsel %vm535, %v241, %v377
  %v551 = vsel %vm535, %v242, %v379
  %vm552 = vcmask 523264
  %v554 = vsel %vm552, %v537, %v406
  %v556 = vsel %vm552, %v539, %v408
  %v558 = vsel %vm552, %v541, %v410
  %v560 = vsel %vm552, %v543, %v412
  %v562 = vsel %vm552, %v545, %v414
  %v564 = vsel %vm552, %v547, %v416
  %v566 = vsel %vm552, %v549, %v418
  %v568 = vsel %vm552, %v551, %v420
  %vm569 = vcmask 785408
  %v571 = vsel %vm569, %v554, %v495
  %v574 = vsel %vm569, %v556, %v497
  %v577 = vsel %vm569, %v558, %v499
  %v580 = vsel %vm569, %v560, %v501
  %v583 = vsel %vm569, %v562, %v503
  %v586 = vsel %vm569, %v564, %v505
  %v589 = vsel %vm569, %v566, %v507
  %v592 = vsel %vm569, %v568, %v509
  %v594 = vld [vmem:[%s5] sm:$0xff]
  %v595 = vld [vmem:[%s5 + $0x8] sm:$0xf]
  %v596 = vld [vmem:[%s5 + $0xc] sm:$0xff]
  %v597 = vld [vmem:[%s5 + $0x14] sm:$0xf]
  %v598 = vld [vmem:[%s5 + $0x18] sm:$0xff]
  %v599 = vld [vmem:[%s5 + $0x20] sm:$0xf]
  %v600 = vld [vmem:[%s5 + $0x24] sm:$0xff]
  %v601 = vld [vmem:[%s5 + $0x2c] sm:$0xf]
  %v602 = vld [vmem:[%s5 + $0x30] sm:$0xff]
  %v603 = vld [vmem:[%s5 + $0x38] sm:$0xf]
  %v604 = vld [vmem:[%s5 + $0x3c] sm:$0xff]
  %v605 = vld [vmem:[%s5 + $0x44] sm:$0xf]
  %v606 = vld [vmem:[%s5 + $0x48] sm:$0xff]
  %v607 = vld [vmem:[%s5 + $0x50] sm:$0xf]
  %v608 = vld [vmem:[%s5 + $0x54] sm:$0xff]
  %v609 = vld [vmem:[%s5 + $0x5c] sm:$0xf]
  %v610 = vld [vmem:[%s5 + $0x60] sm:$0xff]
  %v611 = vld [vmem:[%s5 + $0x68] sm:$0xf]
  %v612 = vld [vmem:[%s5 + $0x6c] sm:$0xff]
  %v613 = vld [vmem:[%s5 + $0x74] sm:$0xf]
  %v614 = vld [vmem:[%s5 + $0x78] sm:$0xff]
  %v615 = vld [vmem:[%s5 + $0x80] sm:$0xf]
  %v616 = vld [vmem:[%s5 + $0x84] sm:$0xff]
  %v617 = vld [vmem:[%s5 + $0x8c] sm:$0xf]
  %v618 = vld [vmem:[%s5 + $0x90] sm:$0xff]
  %v619 = vld [vmem:[%s5 + $0x98] sm:$0xf]
  %v620 = vld [vmem:[%s5 + $0x9c] sm:$0xff]
  %v621 = vld [vmem:[%s5 + $0xa4] sm:$0xf]
  %v622 = vld [vmem:[%s5 + $0xa8] sm:$0xff]
  %v623 = vld [vmem:[%s5 + $0xb0] sm:$0xf]
  %v624 = vld [vmem:[%s5 + $0xb4] sm:$0xff]
  %v625 = vld [vmem:[%s5 + $0xbc] sm:$0xf]
  %v626 = vld [vmem:[%s5 + $0xc0] sm:$0xff]
  %v627 = vld [vmem:[%s5 + $0xc8] sm:$0xf]
  %v628 = vld [vmem:[%s5 + $0xcc] sm:$0xff]
  %v629 = vld [vmem:[%s5 + $0xd4] sm:$0xf]
  %v630 = vld [vmem:[%s5 + $0xd8] sm:$0xff]
  %v631 = vld [vmem:[%s5 + $0xe0] sm:$0xf]
  %v632 = vld [vmem:[%s5 + $0xe4] sm:$0xff]
  %v633 = vld [vmem:[%s5 + $0xec] sm:$0xf]
  %v674 = vunpack.c.l.b16 %v594
  %v675 = vunpack.c.h.b16 %v594
  %v676 = vunpack.c.l.b16 %v595
  %v677 = vunpack.c.l.b16 %v596
  %v678 = vunpack.c.h.b16 %v596
  %v679 = vunpack.c.l.b16 %v597
  %v680 = vunpack.c.l.b16 %v598
  %v681 = vunpack.c.h.b16 %v598
  %v682 = vunpack.c.l.b16 %v599
  %v683 = vunpack.c.l.b16 %v600
  %v684 = vunpack.c.h.b16 %v600
  %v685 = vunpack.c.l.b16 %v601
  %v686 = vunpack.c.l.b16 %v602
  %v687 = vunpack.c.h.b16 %v602
  %v688 = vunpack.c.l.b16 %v603
  %v689 = vunpack.c.l.b16 %v604
  %v690 = vunpack.c.h.b16 %v604
  %v691 = vunpack.c.l.b16 %v605
  %v692 = vunpack.c.l.b16 %v606
  %v693 = vunpack.c.h.b16 %v606
  %v694 = vunpack.c.l.b16 %v607
  %v695 = vunpack.c.l.b16 %v608
  %v696 = vunpack.c.h.b16 %v608
  %v697 = vunpack.c.l.b16 %v609
  %v698 = vunpack.c.l.b16 %v610
  %v699 = vunpack.c.h.b16 %v610
  %v700 = vunpack.c.l.b16 %v611
  %v701 = vunpack.c.l.b16 %v612
  %v702 = vunpack.c.h.b16 %v612
  %v703 = vunpack.c.l.b16 %v613
  %v704 = vunpack.c.l.b16 %v614
  %v705 = vunpack.c.h.b16 %v614
  %v706 = vunpack.c.l.b16 %v615
  %v707 = vunpack.c.l.b16 %v616
  %v708 = vunpack.c.h.b16 %v616
  %v709 = vunpack.c.l.b16 %v617
  %v710 = vunpack.c.l.b16 %v618
  %v711 = vunpack.c.h.b16 %v618
  %v712 = vunpack.c.l.b16 %v619
  %v713 = vunpack.c.l.b16 %v620
  %v714 = vunpack.c.h.b16 %v620
  %v715 = vunpack.c.l.b16 %v621
  %v716 = vunpack.c.l.b16 %v622
  %v717 = vunpack.c.h.b16 %v622
  %v718 = vunpack.c.l.b16 %v623
  %v719 = vunpack.c.l.b16 %v624
  %v720 = vunpack.c.h.b16 %v624
  %v721 = vunpack.c.l.b16 %v625
  %v722 = vunpack.c.l.b16 %v626
  %v723 = vunpack.c.h.b16 %v626
  %v724 = vunpack.c.l.b16 %v627
  %v725 = vunpack.c.l.b16 %v628
  %v726 = vunpack.c.h.b16 %v628
  %v727 = vunpack.c.l.b16 %v629
  %v728 = vunpack.c.l.b16 %v630
  %v729 = vunpack.c.h.b16 %v630
  %v730 = vunpack.c.l.b16 %v631
  %v731 = vunpack.c.l.b16 %v632
  %v732 = vunpack.c.h.b16 %v632
  %v733 = vunpack.c.l.b16 %v633
  %v734 = vpack.c.b16 %v677, %v674
  %v735 = vpack.c.b16 %v678, %v675
  %v736 = vpack.c.b16 %v679, %v676
  %v737 = vpack.c.b16 %v683, %v680
  %v738 = vpack.c.b16 %v684, %v681
  %v739 = vpack.c.b16 %v685, %v682
  %v740 = vpack.c.b16 %v689, %v686
  %v741 = vpack.c.b16 %v690, %v687
  %v742 = vpack.c.b16 %v691, %v688
  %v743 = vpack.c.b16 %v695, %v692
  %v744 = vpack.c.b16 %v696, %v693
  %v745 = vpack.c.b16 %v697, %v694
  %v746 = vpack.c.b16 %v701, %v698
  %v747 = vpack.c.b16 %v702, %v699
  %v748 = vpack.c.b16 %v703, %v700
  %v749 = vpack.c.b16 %v707, %v704
  %v750 = vpack.c.b16 %v708, %v705
  %v751 = vpack.c.b16 %v709, %v706
  %v752 = vpack.c.b16 %v713, %v710
  %v753 = vpack.c.b16 %v714, %v711
  %v754 = vpack.c.b16 %v715, %v712
  %v755 = vpack.c.b16 %v719, %v716
  %v756 = vpack.c.b16 %v720, %v717
  %v757 = vpack.c.b16 %v721, %v718
  %v758 = vpack.c.b16 %v725, %v722
  %v759 = vpack.c.b16 %v726, %v723
  %v760 = vpack.c.b16 %v727, %v724
  %v761 = vpack.c.b16 %v731, %v728
  %v762 = vpack.c.b16 %v732, %v729
  %v763 = vpack.c.b16 %v733, %v730
  %v795 = vsel %vm535, %v513, 0
  %v798 = vsel %vm535, %v516, 0
  %v801 = vsel %vm535, %v519, 0
  %v804 = vsel %vm535, %v522, 0
  %v807 = vsel %vm535, %v525, 0
  %v810 = vsel %vm535, %v528, 0
  %v813 = vsel %vm535, %v531, 0
  %v816 = vsel %vm535, %v534, 0
  %818 = vmatpush.bf16.msra.mxu0 %v755
  %819 = vmatpush.bf16.msra.mxu0 %v752
  %820 = vmatpush.bf16.msra.mxu0 %v749
  %821 = vmatpush.bf16.msra.mxu0 %v746
  %822 = vmatpush.bf16.msra.mxu0 %v743
  %823 = vmatpush.bf16.msra.mxu0 %v740
  %824 = vmatpush.bf16.msra.mxu0 %v737
  %825 = vmatpush.bf16.msra.mxu0 %v734
  %826 = vmatmul.bf16.gmra.mxu0 %v571
  %v827 = vpop.f32.mrf.mxu0
  %v828 = vadd.f32 0.0, %v827
  %v829 = vpop.f32.mrf.mxu0
  %v830 = vadd.f32 0.0, %v829
  %831 = vmatmul.bf16.gmra.mxu0 %v574
  %v832 = vpop.f32.mrf.mxu0
  %v833 = vadd.f32 0.0, %v832
  %v834 = vpop.f32.mrf.mxu0
  %v835 = vadd.f32 0.0, %v834
  %836 = vmatmul.bf16.gmra.mxu0 %v577
  %v837 = vpop.f32.mrf.mxu0
  %v838 = vadd.f32 0.0, %v837
  %v839 = vpop.f32.mrf.mxu0
  %v840 = vadd.f32 0.0, %v839
  %841 = vmatmul.bf16.gmra.mxu0 %v580
  %v842 = vpop.f32.mrf.mxu0
  %v843 = vadd.f32 0.0, %v842
  %v844 = vpop.f32.mrf.mxu0
  %v845 = vadd.f32 0.0, %v844
  %846 = vmatmul.bf16.gmra.mxu0 %v583
  %v847 = vpop.f32.mrf.mxu0
  %v848 = vadd.f32 0.0, %v847
  %v849 = vpop.f32.mrf.mxu0
  %v850 = vadd.f32 0.0, %v849
  %851 = vmatmul.bf16.gmra.mxu0 %v586
  %v852 = vpop.f32.mrf.mxu0
  %v853 = vadd.f32 0.0, %v852
  %v854 = vpop.f32.mrf.mxu0
  %v855 = vadd.f32 0.0, %v854
  %856 = vmatmul.bf16.gmra.mxu0 %v589
  %v857 = vpop.f32.mrf.mxu0
  %v858 = vadd.f32 0.0, %v857
  %v859 = vpop.f32.mrf.mxu0
  %v860 = vadd.f32 0.0, %v859
  %861 = vmatmul.bf16.gmra.mxu0 %v592
  %v862 = vpop.f32.mrf.mxu0
  %v863 = vadd.f32 0.0, %v862
  %v864 = vpop.f32.mrf.mxu0
  %v865 = vadd.f32 0.0, %v864
  %866 = vdwg.mxu0
  %867 = vmatpush.bf16.msra.mxu0 0
  %868 = vmatpush.bf16.msra.mxu0 0
  %869 = vmatpush.bf16.msra.mxu0 0
  %870 = vmatpush.bf16.msra.mxu0 0
  %871 = vmatpush.bf16.msra.mxu0 0
  %872 = vmatpush.bf16.msra.mxu0 0
  %873 = vmatpush.bf16.msra.mxu0 %v761
  %874 = vmatpush.bf16.msra.mxu0 %v758
  %875 = vmatmul.bf16.gmra.mxu0 %v795
  %v876 = vpop.f32.mrf.mxu0
  %v877 = vadd.f32 %v828, %v876
  %v878 = vpop.f32.mrf.mxu0
  %v879 = vadd.f32 %v830, %v878
  %880 = vmatmul.bf16.gmra.mxu0 %v798
  %v881 = vpop.f32.mrf.mxu0
  %v882 = vadd.f32 %v833, %v881
  %v883 = vpop.f32.mrf.mxu0
  %v884 = vadd.f32 %v835, %v883
  %885 = vmatmul.bf16.gmra.mxu0 %v801
  %v886 = vpop.f32.mrf.mxu0
  %v887 = vadd.f32 %v838, %v886
  %v888 = vpop.f32.mrf.mxu0
  %v889 = vadd.f32 %v840, %v888
  %890 = vmatmul.bf16.gmra.mxu0 %v804
  %v891 = vpop.f32.mrf.mxu0
  %v892 = vadd.f32 %v843, %v891
  %v893 = vpop.f32.mrf.mxu0
  %v894 = vadd.f32 %v845, %v893
  %895 = vmatmul.bf16.gmra.mxu0 %v807
  %v896 = vpop.f32.mrf.mxu0
  %v897 = vadd.f32 %v848, %v896
  %v898 = vpop.f32.mrf.mxu0
  %v899 = vadd.f32 %v850, %v898
  %900 = vmatmul.bf16.gmra.mxu0 %v810
  %v901 = vpop.f32.mrf.mxu0
  %v902 = vadd.f32 %v853, %v901
  %v903 = vpop.f32.mrf.mxu0
  %v904 = vadd.f32 %v855, %v903
  %905 = vmatmul.bf16.gmra.mxu0 %v813
  %v906 = vpop.f32.mrf.mxu0
  %v907 = vadd.f32 %v858, %v906
  %v908 = vpop.f32.mrf.mxu0
  %v909 = vadd.f32 %v860, %v908
  %910 = vmatmul.bf16.gmra.mxu0 %v816
  %v911 = vpop.f32.mrf.mxu0
  %v912 = vadd.f32 %v863, %v911
  %v913 = vpop.f32.mrf.mxu0
  %v914 = vadd.f32 %v865, %v913
  %915 = vdwg.mxu0
  %916 = vmatpush.bf16.msra.mxu0 %v756
  %917 = vmatpush.bf16.msra.mxu0 %v753
  %918 = vmatpush.bf16.msra.mxu0 %v750
  %919 = vmatpush.bf16.msra.mxu0 %v747
  %920 = vmatpush.bf16.msra.mxu0 %v744
  %921 = vmatpush.bf16.msra.mxu0 %v741
  %922 = vmatpush.bf16.msra.mxu0 %v738
  %923 = vmatpush.bf16.msra.mxu0 %v735
  %924 = vmatmul.bf16.gmra.mxu0 %v571
  %v925 = vpop.f32.mrf.mxu0
  %v926 = vadd.f32 0.0, %v925
  %v927 = vpop.f32.mrf.mxu0
  %v928 = vadd.f32 0.0, %v927
  %929 = vmatmul.bf16.gmra.mxu0 %v574
  %v930 = vpop.f32.mrf.mxu0
  %v931 = vadd.f32 0.0, %v930
  %v932 = vpop.f32.mrf.mxu0
  %v933 = vadd.f32 0.0, %v932
  %934 = vmatmul.bf16.gmra.mxu0 %v577
  %v935 = vpop.f32.mrf.mxu0
  %v936 = vadd.f32 0.0, %v935
  %v937 = vpop.f32.mrf.mxu0
  %v938 = vadd.f32 0.0, %v937
  %939 = vmatmul.bf16.gmra.mxu0 %v580
  %v940 = vpop.f32.mrf.mxu0
  %v941 = vadd.f32 0.0, %v940
  %v942 = vpop.f32.mrf.mxu0
  %v943 = vadd.f32 0.0, %v942
  %944 = vmatmul.bf16.gmra.mxu0 %v583
  %v945 = vpop.f32.mrf.mxu0
  %v946 = vadd.f32 0.0, %v945
  %v947 = vpop.f32.mrf.mxu0
  %v948 = vadd.f32 0.0, %v947
  %949 = vmatmul.bf16.gmra.mxu0 %v586
  %v950 = vpop.f32.mrf.mxu0
  %v951 = vadd.f32 0.0, %v950
  %v952 = vpop.f32.mrf.mxu0
  %v953 = vadd.f32 0.0, %v952
  %954 = vmatmul.bf16.gmra.mxu0 %v589
  %v955 = vpop.f32.mrf.mxu0
  %v956 = vadd.f32 0.0, %v955
  %v957 = vpop.f32.mrf.mxu0
  %v958 = vadd.f32 0.0, %v957
  %959 = vmatmul.bf16.gmra.mxu0 %v592
  %v960 = vpop.f32.mrf.mxu0
  %v961 = vadd.f32 0.0, %v960
  %v962 = vpop.f32.mrf.mxu0
  %v963 = vadd.f32 0.0, %v962
  %964 = vdwg.mxu0
  %965 = vmatpush.bf16.msra.mxu0 0
  %966 = vmatpush.bf16.msra.mxu0 0
  %967 = vmatpush.bf16.msra.mxu0 0
  %968 = vmatpush.bf16.msra.mxu0 0
  %969 = vmatpush.bf16.msra.mxu0 0
  %970 = vmatpush.bf16.msra.mxu0 0
  %971 = vmatpush.bf16.msra.mxu0 %v762
  %972 = vmatpush.bf16.msra.mxu0 %v759
  %973 = vmatmul.bf16.gmra.mxu0 %v795
  %v974 = vpop.f32.mrf.mxu0
  %v975 = vadd.f32 %v926, %v974
  %v976 = vpop.f32.mrf.mxu0
  %v977 = vadd.f32 %v928, %v976
  %978 = vmatmul.bf16.gmra.mxu0 %v798
  %v979 = vpop.f32.mrf.mxu0
  %v980 = vadd.f32 %v931, %v979
  %v981 = vpop.f32.mrf.mxu0
  %v982 = vadd.f32 %v933, %v981
  %983 = vmatmul.bf16.gmra.mxu0 %v801
  %v984 = vpop.f32.mrf.mxu0
  %v985 = vadd.f32 %v936, %v984
  %v986 = vpop.f32.mrf.mxu0
  %v987 = vadd.f32 %v938, %v986
  %988 = vmatmul.bf16.gmra.mxu0 %v804
  %v989 = vpop.f32.mrf.mxu0
  %v990 = vadd.f32 %v941, %v989
  %v991 = vpop.f32.mrf.mxu0
  %v992 = vadd.f32 %v943, %v991
  %993 = vmatmul.bf16.gmra.mxu0 %v807
  %v994 = vpop.f32.mrf.mxu0
  %v995 = vadd.f32 %v946, %v994
  %v996 = vpop.f32.mrf.mxu0
  %v997 = vadd.f32 %v948, %v996
  %998 = vmatmul.bf16.gmra.mxu0 %v810
  %v999 = vpop.f32.mrf.mxu0
  %v1000 = vadd.f32 %v951, %v999
  %v1001 = vpop.f32.mrf.mxu0
  %v1002 = vadd.f32 %v953, %v1001
  %1003 = vmatmul.bf16.gmra.mxu0 %v813
  %v1004 = vpop.f32.mrf.mxu0
  %v1005 = vadd.f32 %v956, %v1004
  %v1006 = vpop.f32.mrf.mxu0
  %v1007 = vadd.f32 %v958, %v1006
  %1008 = vmatmul.bf16.gmra.mxu0 %v816
  %v1009 = vpop.f32.mrf.mxu0
  %v1010 = vadd.f32 %v961, %v1009
  %v1011 = vpop.f32.mrf.mxu0
  %v1012 = vadd.f32 %v963, %v1011
  %1013 = vdwg.mxu0
  %1014 = vmatpush.bf16.msra.mxu0 %v757
  %1015 = vmatpush.bf16.msra.mxu0 %v754
  %1016 = vmatpush.bf16.msra.mxu0 %v751
  %1017 = vmatpush.bf16.msra.mxu0 %v748
  %1018 = vmatpush.bf16.msra.mxu0 %v745
  %1019 = vmatpush.bf16.msra.mxu0 %v742
  %1020 = vmatpush.bf16.msra.mxu0 %v739
  %1021 = vmatpush.bf16.msra.mxu0 %v736
  %1022 = vmatmul.bf16.gmra.mxu0 %v571
  %v1023 = vpop.f32.mrf.mxu0
  %v1024 = vadd.f32 0.0, %v1023
  %v1025 = vpop.f32.mrf.mxu0
  %v1026 = vadd.f32 0.0, %v1025
  %1027 = vmatmul.bf16.gmra.mxu0 %v574
  %v1028 = vpop.f32.mrf.mxu0
  %v1029 = vadd.f32 0.0, %v1028
  %v1030 = vpop.f32.mrf.mxu0
  %v1031 = vadd.f32 0.0, %v1030
  %1032 = vmatmul.bf16.gmra.mxu0 %v577
  %v1033 = vpop.f32.mrf.mxu0
  %v1034 = vadd.f32 0.0, %v1033
  %v1035 = vpop.f32.mrf.mxu0
  %v1036 = vadd.f32 0.0, %v1035
  %1037 = vmatmul.bf16.gmra.mxu0 %v580
  %v1038 = vpop.f32.mrf.mxu0
  %v1039 = vadd.f32 0.0, %v1038
  %v1040 = vpop.f32.mrf.mxu0
  %v1041 = vadd.f32 0.0, %v1040
  %1042 = vmatmul.bf16.gmra.mxu0 %v583
  %v1043 = vpop.f32.mrf.mxu0
  %v1044 = vadd.f32 0.0, %v1043
  %v1045 = vpop.f32.mrf.mxu0
  %v1046 = vadd.f32 0.0, %v1045
  %1047 = vmatmul.bf16.gmra.mxu0 %v586
  %v1048 = vpop.f32.mrf.mxu0
  %v1049 = vadd.f32 0.0, %v1048
  %v1050 = vpop.f32.mrf.mxu0
  %v1051 = vadd.f32 0.0, %v1050
  %1052 = vmatmul.bf16.gmra.mxu0 %v589
  %v1053 = vpop.f32.mrf.mxu0
  %v1054 = vadd.f32 0.0, %v1053
  %v1055 = vpop.f32.mrf.mxu0
  %v1056 = vadd.f32 0.0, %v1055
  %1057 = vmatmul.bf16.gmra.mxu0 %v592
  %v1058 = vpop.f32.mrf.mxu0
  %v1059 = vadd.f32 0.0, %v1058
  %v1060 = vpop.f32.mrf.mxu0
  %v1061 = vadd.f32 0.0, %v1060
  %1062 = vdwg.mxu0
  %1063 = vmatpush.bf16.msra.mxu0 0
  %1064 = vmatpush.bf16.msra.mxu0 0
  %1065 = vmatpush.bf16.msra.mxu0 0
  %1066 = vmatpush.bf16.msra.mxu0 0
  %1067 = vmatpush.bf16.msra.mxu0 0
  %1068 = vmatpush.bf16.msra.mxu0 0
  %1069 = vmatpush.bf16.msra.mxu0 %v763
  %1070 = vmatpush.bf16.msra.mxu0 %v760
  %1071 = vmatmul.bf16.gmra.mxu0 %v795
  %v1072 = vpop.f32.mrf.mxu0
  %v1073 = vadd.f32 %v1024, %v1072
  %v1074 = vpop.f32.mrf.mxu0
  %v1075 = vadd.f32 %v1026, %v1074
  %1076 = vmatmul.bf16.gmra.mxu0 %v798
  %v1077 = vpop.f32.mrf.mxu0
  %v1078 = vadd.f32 %v1029, %v1077
  %v1079 = vpop.f32.mrf.mxu0
  %v1080 = vadd.f32 %v1031, %v1079
  %1081 = vmatmul.bf16.gmra.mxu0 %v801
  %v1082 = vpop.f32.mrf.mxu0
  %v1083 = vadd.f32 %v1034, %v1082
  %v1084 = vpop.f32.mrf.mxu0
  %v1085 = vadd.f32 %v1036, %v1084
  %1086 = vmatmul.bf16.gmra.mxu0 %v804
  %v1087 = vpop.f32.mrf.mxu0
  %v1088 = vadd.f32 %v1039, %v1087
  %v1089 = vpop.f32.mrf.mxu0
  %v1090 = vadd.f32 %v1041, %v1089
  %1091 = vmatmul.bf16.gmra.mxu0 %v807
  %v1092 = vpop.f32.mrf.mxu0
  %v1093 = vadd.f32 %v1044, %v1092
  %v1094 = vpop.f32.mrf.mxu0
  %v1095 = vadd.f32 %v1046, %v1094
  %1096 = vmatmul.bf16.gmra.mxu0 %v810
  %v1097 = vpop.f32.mrf.mxu0
  %v1098 = vadd.f32 %v1049, %v1097
  %v1099 = vpop.f32.mrf.mxu0
  %v1100 = vadd.f32 %v1051, %v1099
  %1101 = vmatmul.bf16.gmra.mxu0 %v813
  %v1102 = vpop.f32.mrf.mxu0
  %v1103 = vadd.f32 %v1054, %v1102
  %v1104 = vpop.f32.mrf.mxu0
  %v1105 = vadd.f32 %v1056, %v1104
  %1106 = vmatmul.bf16.gmra.mxu0 %v816
  %v1107 = vpop.f32.mrf.mxu0
  %v1108 = vadd.f32 %v1059, %v1107
  %v1109 = vpop.f32.mrf.mxu0
  %v1110 = vadd.f32 %v1061, %v1109
  %1111 = vdwg.mxu0
  %v1112 = vld [vmem:[%s6] sm:$0x7]
  %v1114 = vperm.slane %v1112, 0
  %v1115 = vperm.slane %v1112, 1
  %v1116 = vperm.slane %v1112, 2
  %v1120 = vadd.f32 %v877, %v1114
  %v1121 = vadd.f32 %v975, %v1115
  %v1122 = vadd.f32 %v1073, %v1116
  %v1123 = vadd.f32 %v879, %v1114
  %v1124 = vadd.f32 %v977, %v1115
  %v1125 = vadd.f32 %v1075, %v1116
  %v1126 = vadd.f32 %v882, %v1114
  %v1127 = vadd.f32 %v980, %v1115
  %v1128 = vadd.f32 %v1078, %v1116
  %v1129 = vadd.f32 %v884, %v1114
  %v1130 = vadd.f32 %v982, %v1115
  %v1131 = vadd.f32 %v1080, %v1116
  %v1132 = vadd.f32 %v887, %v1114
  %v1133 = vadd.f32 %v985, %v1115
  %v1134 = vadd.f32 %v1083, %v1116
  %v1135 = vadd.f32 %v889, %v1114
  %v1136 = vadd.f32 %v987, %v1115
  %v1137 = vadd.f32 %v1085, %v1116
  %v1138 = vadd.f32 %v892, %v1114
  %v1139 = vadd.f32 %v990, %v1115
  %v1140 = vadd.f32 %v1088, %v1116
  %v1141 = vadd.f32 %v894, %v1114
  %v1142 = vadd.f32 %v992, %v1115
  %v1143 = vadd.f32 %v1090, %v1116
  %v1144 = vadd.f32 %v897, %v1114
  %v1145 = vadd.f32 %v995, %v1115
  %v1146 = vadd.f32 %v1093, %v1116
  %v1147 = vadd.f32 %v899, %v1114
  %v1148 = vadd.f32 %v997, %v1115
  %v1149 = vadd.f32 %v1095, %v1116
  %v1150 = vadd.f32 %v902, %v1114
  %v1151 = vadd.f32 %v1000, %v1115
  %v1152 = vadd.f32 %v1098, %v1116
  %v1153 = vadd.f32 %v904, %v1114
  %v1154 = vadd.f32 %v1002, %v1115
  %v1155 = vadd.f32 %v1100, %v1116
  %v1156 = vadd.f32 %v907, %v1114
  %v1157 = vadd.f32 %v1005, %v1115
  %v1158 = vadd.f32 %v1103, %v1116
  %v1159 = vadd.f32 %v909, %v1114
  %v1160 = vadd.f32 %v1007, %v1115
  %v1161 = vadd.f32 %v1105, %v1116
  %v1162 = vadd.f32 %v912, %v1114
  %v1163 = vadd.f32 %v1010, %v1115
  %v1164 = vadd.f32 %v1108, %v1116
  %v1165 = vadd.f32 %v914, %v1114
  %v1166 = vadd.f32 %v1012, %v1115
  %v1167 = vadd.f32 %v1110, %v1116
  %v1168 = vmax.f32 %v1120, 0.0
  %v1169 = vmax.f32 %v1121, 0.0
  %v1170 = vmax.f32 %v1122, 0.0
  %v1171 = vmax.f32 %v1123, 0.0
  %v1172 = vmax.f32 %v1124, 0.0
  %v1173 = vmax.f32 %v1125, 0.0
  %v1174 = vmax.f32 %v1126, 0.0
  %v1175 = vmax.f32 %v1127, 0.0
  %v1176 = vmax.f32 %v1128, 0.0
  %v1177 = vmax.f32 %v1129, 0.0
  %v1178 = vmax.f32 %v1130, 0.0
  %v1179 = vmax.f32 %v1131, 0.0
  %v1180 = vmax.f32 %v1132, 0.0
  %v1181 = vmax.f32 %v1133, 0.0
  %v1182 = vmax.f32 %v1134, 0.0
  %v1183 = vmax.f32 %v1135, 0.0
  %v1184 = vmax.f32 %v1136, 0.0
  %v1185 = vmax.f32 %v1137, 0.0
  %v1186 = vmax.f32 %v1138, 0.0
  %v1187 = vmax.f32 %v1139, 0.0
  %v1188 = vmax.f32 %v1140, 0.0
  %v1189 = vmax.f32 %v1141, 0.0
  %v1190 = vmax.f32 %v1142, 0.0
  %v1191 = vmax.f32 %v1143, 0.0
  %v1192 = vmax.f32 %v1144, 0.0
  %v1193 = vmax.f32 %v1145, 0.0
  %v1194 = vmax.f32 %v1146, 0.0
  %v1195 = vmax.f32 %v1147, 0.0
  %v1196 = vmax.f32 %v1148, 0.0
  %v1197 = vmax.f32 %v1149, 0.0
  %v1198 = vmax.f32 %v1150, 0.0
  %v1199 = vmax.f32 %v1151, 0.0
  %v1200 = vmax.f32 %v1152, 0.0
  %v1201 = vmax.f32 %v1153, 0.0
  %v1202 = vmax.f32 %v1154, 0.0
  %v1203 = vmax.f32 %v1155, 0.0
  %v1204 = vmax.f32 %v1156, 0.0
  %v1205 = vmax.f32 %v1157, 0.0
  %v1206 = vmax.f32 %v1158, 0.0
  %v1207 = vmax.f32 %v1159, 0.0
  %v1208 = vmax.f32 %v1160, 0.0
  %v1209 = vmax.f32 %v1161, 0.0
  %v1210 = vmax.f32 %v1162, 0.0
  %v1211 = vmax.f32 %v1163, 0.0
  %v1212 = vmax.f32 %v1164, 0.0
  %v1213 = vmax.f32 %v1165, 0.0
  %v1214 = vmax.f32 %v1166, 0.0
  %v1215 = vmax.f32 %v1167, 0.0
  %v1216 = vld [vmem:[%s7] sm:$0xff]
  %v1217 = vld [vmem:[%s7 + $0x8] sm:$0xff]
  %v1218 = vld [vmem:[%s7 + $0x10] sm:$0xff]
  %v1219 = vld [vmem:[%s7 + $0x18] sm:$0xff]
  %v1220 = vld [vmem:[%s7 + $0x20] sm:$0xff]
  %v1221 = vld [vmem:[%s7 + $0x28] sm:$0xff]
  %v1222 = vmul.f32 %v1168, %v1216
  %v1223 = vmul.f32 %v1169, %v1217
  %v1224 = vmul.f32 %v1170, %v1218
  %v1225 = vmul.f32 %v1171, %v1219
  %v1226 = vmul.f32 %v1172, %v1220
  %v1227 = vmul.f32 %v1173, %v1221
  %v1228 = vmul.f32 %v1174, %v1216
  %v1229 = vmul.f32 %v1175, %v1217
  %v1230 = vmul.f32 %v1176, %v1218
  %v1231 = vmul.f32 %v1177, %v1219
  %v1232 = vmul.f32 %v1178, %v1220
  %v1233 = vmul.f32 %v1179, %v1221
  %v1234 = vmul.f32 %v1180, %v1216
  %v1235 = vmul.f32 %v1181, %v1217
  %v1236 = vmul.f32 %v1182, %v1218
  %v1237 = vmul.f32 %v1183, %v1219
  %v1238 = vmul.f32 %v1184, %v1220
  %v1239 = vmul.f32 %v1185, %v1221
  %v1240 = vmul.f32 %v1186, %v1216
  %v1241 = vmul.f32 %v1187, %v1217
  %v1242 = vmul.f32 %v1188, %v1218
  %v1243 = vmul.f32 %v1189, %v1219
  %v1244 = vmul.f32 %v1190, %v1220
  %v1245 = vmul.f32 %v1191, %v1221
  %v1246 = vmul.f32 %v1192, %v1216
  %v1247 = vmul.f32 %v1193, %v1217
  %v1248 = vmul.f32 %v1194, %v1218
  %v1249 = vmul.f32 %v1195, %v1219
  %v1250 = vmul.f32 %v1196, %v1220
  %v1251 = vmul.f32 %v1197, %v1221
  %v1252 = vmul.f32 %v1198, %v1216
  %v1253 = vmul.f32 %v1199, %v1217
  %v1254 = vmul.f32 %v1200, %v1218
  %v1255 = vmul.f32 %v1201, %v1219
  %v1256 = vmul.f32 %v1202, %v1220
  %v1257 = vmul.f32 %v1203, %v1221
  %v1258 = vmul.f32 %v1204, %v1216
  %v1259 = vmul.f32 %v1205, %v1217
  %v1260 = vmul.f32 %v1206, %v1218
  %v1261 = vmul.f32 %v1207, %v1219
  %v1262 = vmul.f32 %v1208, %v1220
  %v1263 = vmul.f32 %v1209, %v1221
  %v1264 = vmul.f32 %v1210, %v1216
  %v1265 = vmul.f32 %v1211, %v1217
  %v1266 = vmul.f32 %v1212, %v1218
  %v1267 = vmul.f32 %v1213, %v1219
  %v1268 = vmul.f32 %v1214, %v1220
  %v1269 = vmul.f32 %v1215, %v1221
  %v1270 = vmax.f32 %v1222, %v1225
  %v1271 = vrot.slane %v1270, 4
  %v1272 = vmax.f32 %v1270, %v1271
  %v1273 = vrot.slane %v1272, 2
  %v1274 = vmax.f32 %v1272, %v1273
  %v1275 = vrot.slane %v1274, 1
  %v1276 = vmax.f32 %v1274, %v1275
  %v1277 = vmax.f32 %v1223, %v1226
  %v1278 = vrot.slane %v1277, 4
  %v1279 = vmax.f32 %v1277, %v1278
  %v1280 = vrot.slane %v1279, 2
  %v1281 = vmax.f32 %v1279, %v1280
  %v1282 = vrot.slane %v1281, 1
  %v1283 = vmax.f32 %v1281, %v1282
  %v1284 = vmax.f32 %v1224, %v1227
  %v1285 = vrot.slane %v1284, 4
  %v1286 = vmax.f32 %v1284, %v1285
  %v1287 = vrot.slane %v1286, 2
  %v1288 = vmax.f32 %v1286, %v1287
  %v1289 = vrot.slane %v1288, 1
  %v1290 = vmax.f32 %v1288, %v1289
  %v1291 = vmax.f32 %v1228, %v1231
  %v1292 = vrot.slane %v1291, 4
  %v1293 = vmax.f32 %v1291, %v1292
  %v1294 = vrot.slane %v1293, 2
  %v1295 = vmax.f32 %v1293, %v1294
  %v1296 = vrot.slane %v1295, 1
  %v1297 = vmax.f32 %v1295, %v1296
  %v1298 = vmax.f32 %v1229, %v1232
  %v1299 = vrot.slane %v1298, 4
  %v1300 = vmax.f32 %v1298, %v1299
  %v1301 = vrot.slane %v1300, 2
  %v1302 = vmax.f32 %v1300, %v1301
  %v1303 = vrot.slane %v1302, 1
  %v1304 = vmax.f32 %v1302, %v1303
  %v1305 = vmax.f32 %v1230, %v1233
  %v1306 = vrot.slane %v1305, 4
  %v1307 = vmax.f32 %v1305, %v1306
  %v1308 = vrot.slane %v1307, 2
  %v1309 = vmax.f32 %v1307, %v1308
  %v1310 = vrot.slane %v1309, 1
  %v1311 = vmax.f32 %v1309, %v1310
  %v1312 = vmax.f32 %v1234, %v1237
  %v1313 = vrot.slane %v1312, 4
  %v1314 = vmax.f32 %v1312, %v1313
  %v1315 = vrot.slane %v1314, 2
  %v1316 = vmax.f32 %v1314, %v1315
  %v1317 = vrot.slane %v1316, 1
  %v1318 = vmax.f32 %v1316, %v1317
  %v1319 = vmax.f32 %v1235, %v1238
  %v1320 = vrot.slane %v1319, 4
  %v1321 = vmax.f32 %v1319, %v1320
  %v1322 = vrot.slane %v1321, 2
  %v1323 = vmax.f32 %v1321, %v1322
  %v1324 = vrot.slane %v1323, 1
  %v1325 = vmax.f32 %v1323, %v1324
  %v1326 = vmax.f32 %v1236, %v1239
  %v1327 = vrot.slane %v1326, 4
  %v1328 = vmax.f32 %v1326, %v1327
  %v1329 = vrot.slane %v1328, 2
  %v1330 = vmax.f32 %v1328, %v1329
  %v1331 = vrot.slane %v1330, 1
  %v1332 = vmax.f32 %v1330, %v1331
  %v1333 = vmax.f32 %v1240, %v1243
  %v1334 = vrot.slane %v1333, 4
  %v1335 = vmax.f32 %v1333, %v1334
  %v1336 = vrot.slane %v1335, 2
  %v1337 = vmax.f32 %v1335, %v1336
  %v1338 = vrot.slane %v1337, 1
  %v1339 = vmax.f32 %v1337, %v1338
  %v1340 = vmax.f32 %v1241, %v1244
  %v1341 = vrot.slane %v1340, 4
  %v1342 = vmax.f32 %v1340, %v1341
  %v1343 = vrot.slane %v1342, 2
  %v1344 = vmax.f32 %v1342, %v1343
  %v1345 = vrot.slane %v1344, 1
  %v1346 = vmax.f32 %v1344, %v1345
  %v1347 = vmax.f32 %v1242, %v1245
  %v1348 = vrot.slane %v1347, 4
  %v1349 = vmax.f32 %v1347, %v1348
  %v1350 = vrot.slane %v1349, 2
  %v1351 = vmax.f32 %v1349, %v1350
  %v1352 = vrot.slane %v1351, 1
  %v1353 = vmax.f32 %v1351, %v1352
  %v1354 = vmax.f32 %v1246, %v1249
  %v1355 = vrot.slane %v1354, 4
  %v1356 = vmax.f32 %v1354, %v1355
  %v1357 = vrot.slane %v1356, 2
  %v1358 = vmax.f32 %v1356, %v1357
  %v1359 = vrot.slane %v1358, 1
  %v1360 = vmax.f32 %v1358, %v1359
  %v1361 = vmax.f32 %v1247, %v1250
  %v1362 = vrot.slane %v1361, 4
  %v1363 = vmax.f32 %v1361, %v1362
  %v1364 = vrot.slane %v1363, 2
  %v1365 = vmax.f32 %v1363, %v1364
  %v1366 = vrot.slane %v1365, 1
  %v1367 = vmax.f32 %v1365, %v1366
  %v1368 = vmax.f32 %v1248, %v1251
  %v1369 = vrot.slane %v1368, 4
  %v1370 = vmax.f32 %v1368, %v1369
  %v1371 = vrot.slane %v1370, 2
  %v1372 = vmax.f32 %v1370, %v1371
  %v1373 = vrot.slane %v1372, 1
  %v1374 = vmax.f32 %v1372, %v1373
  %v1375 = vmax.f32 %v1252, %v1255
  %v1376 = vrot.slane %v1375, 4
  %v1377 = vmax.f32 %v1375, %v1376
  %v1378 = vrot.slane %v1377, 2
  %v1379 = vmax.f32 %v1377, %v1378
  %v1380 = vrot.slane %v1379, 1
  %v1381 = vmax.f32 %v1379, %v1380
  %v1382 = vmax.f32 %v1253, %v1256
  %v1383 = vrot.slane %v1382, 4
  %v1384 = vmax.f32 %v1382, %v1383
  %v1385 = vrot.slane %v1384, 2
  %v1386 = vmax.f32 %v1384, %v1385
  %v1387 = vrot.slane %v1386, 1
  %v1388 = vmax.f32 %v1386, %v1387
  %v1389 = vmax.f32 %v1254, %v1257
  %v1390 = vrot.slane %v1389, 4
  %v1391 = vmax.f32 %v1389, %v1390
  %v1392 = vrot.slane %v1391, 2
  %v1393 = vmax.f32 %v1391, %v1392
  %v1394 = vrot.slane %v1393, 1
  %v1395 = vmax.f32 %v1393, %v1394
  %v1396 = vmax.f32 %v1258, %v1261
  %v1397 = vrot.slane %v1396, 4
  %v1398 = vmax.f32 %v1396, %v1397
  %v1399 = vrot.slane %v1398, 2
  %v1400 = vmax.f32 %v1398, %v1399
  %v1401 = vrot.slane %v1400, 1
  %v1402 = vmax.f32 %v1400, %v1401
  %v1403 = vmax.f32 %v1259, %v1262
  %v1404 = vrot.slane %v1403, 4
  %v1405 = vmax.f32 %v1403, %v1404
  %v1406 = vrot.slane %v1405, 2
  %v1407 = vmax.f32 %v1405, %v1406
  %v1408 = vrot.slane %v1407, 1
  %v1409 = vmax.f32 %v1407, %v1408
  %v1410 = vmax.f32 %v1260, %v1263
  %v1411 = vrot.slane %v1410, 4
  %v1412 = vmax.f32 %v1410, %v1411
  %v1413 = vrot.slane %v1412, 2
  %v1414 = vmax.f32 %v1412, %v1413
  %v1415 = vrot.slane %v1414, 1
  %v1416 = vmax.f32 %v1414, %v1415
  %v1417 = vmax.f32 %v1264, %v1267
  %v1418 = vrot.slane %v1417, 4
  %v1419 = vmax.f32 %v1417, %v1418
  %v1420 = vrot.slane %v1419, 2
  %v1421 = vmax.f32 %v1419, %v1420
  %v1422 = vrot.slane %v1421, 1
  %v1423 = vmax.f32 %v1421, %v1422
  %v1424 = vmax.f32 %v1265, %v1268
  %v1425 = vrot.slane %v1424, 4
  %v1426 = vmax.f32 %v1424, %v1425
  %v1427 = vrot.slane %v1426, 2
  %v1428 = vmax.f32 %v1426, %v1427
  %v1429 = vrot.slane %v1428, 1
  %v1430 = vmax.f32 %v1428, %v1429
  %v1431 = vmax.f32 %v1266, %v1269
  %v1432 = vrot.slane %v1431, 4
  %v1433 = vmax.f32 %v1431, %v1432
  %v1434 = vrot.slane %v1433, 2
  %v1435 = vmax.f32 %v1433, %v1434
  %v1436 = vrot.slane %v1435, 1
  %v1437 = vmax.f32 %v1435, %v1436
  %v1438 = vpack.c.bf16 %v1276, %v1276
  %v1439 = vpack.c.bf16 %v1283, %v1283
  %v1440 = vpack.c.bf16 %v1290, %v1290
  %v1441 = vpack.c.bf16 %v1297, %v1297
  %v1442 = vpack.c.bf16 %v1304, %v1304
  %v1443 = vpack.c.bf16 %v1311, %v1311
  %v1444 = vpack.c.bf16 %v1318, %v1318
  %v1445 = vpack.c.bf16 %v1325, %v1325
  %v1446 = vpack.c.bf16 %v1332, %v1332
  %v1447 = vpack.c.bf16 %v1339, %v1339
  %v1448 = vpack.c.bf16 %v1346, %v1346
  %v1449 = vpack.c.bf16 %v1353, %v1353
  %v1450 = vpack.c.bf16 %v1360, %v1360
  %v1451 = vpack.c.bf16 %v1367, %v1367
  %v1452 = vpack.c.bf16 %v1374, %v1374
  %v1453 = vpack.c.bf16 %v1381, %v1381
  %v1454 = vpack.c.bf16 %v1388, %v1388
  %v1455 = vpack.c.bf16 %v1395, %v1395
  %v1456 = vpack.c.bf16 %v1402, %v1402
  %v1457 = vpack.c.bf16 %v1409, %v1409
  %v1458 = vpack.c.bf16 %v1416, %v1416
  %v1459 = vpack.c.bf16 %v1423, %v1423
  %v1460 = vpack.c.bf16 %v1430, %v1430
  %v1461 = vpack.c.bf16 %v1437, %v1437
  %v1462 = vld [vmem:[%s8] sm:$0xff]
  %v1463 = vld [vmem:[%s8 + $0x8] sm:$0xff]
  %v1464 = vld [vmem:[%s8 + $0x10] sm:$0xff]
  %v1465 = vld [vmem:[%s8 + $0x18] sm:$0xff]
  %v1466 = vld [vmem:[%s8 + $0x20] sm:$0xff]
  %v1467 = vld [vmem:[%s8 + $0x28] sm:$0xff]
  %v1468 = vld [vmem:[%s8 + $0x30] sm:$0xff]
  %v1469 = vld [vmem:[%s8 + $0x38] sm:$0xff]
  %v1470 = vld [vmem:[%s8 + $0x40] sm:$0xff]
  %v1471 = vld [vmem:[%s8 + $0x48] sm:$0xff]
  %v1472 = vld [vmem:[%s8 + $0x50] sm:$0xff]
  %v1473 = vld [vmem:[%s8 + $0x58] sm:$0xff]
  %v1474 = vld [vmem:[%s8 + $0x60] sm:$0xff]
  %v1475 = vld [vmem:[%s8 + $0x68] sm:$0xff]
  %v1476 = vld [vmem:[%s8 + $0x70] sm:$0xff]
  %v1477 = vld [vmem:[%s8 + $0x78] sm:$0xff]
  %v1478 = vld [vmem:[%s8 + $0x80] sm:$0xff]
  %v1479 = vld [vmem:[%s8 + $0x88] sm:$0xff]
  %v1480 = vld [vmem:[%s8 + $0x90] sm:$0xff]
  %v1481 = vld [vmem:[%s8 + $0x98] sm:$0xff]
  %v1482 = vld [vmem:[%s8 + $0xa0] sm:$0xff]
  %v1483 = vld [vmem:[%s8 + $0xa8] sm:$0xff]
  %v1484 = vld [vmem:[%s8 + $0xb0] sm:$0xff]
  %v1485 = vld [vmem:[%s8 + $0xb8] sm:$0xff]
  %v1486 = vld [vmem:[%s8 + $0xc0] sm:$0xff]
  %v1487 = vld [vmem:[%s8 + $0xc8] sm:$0xff]
  %v1488 = vld [vmem:[%s8 + $0xd0] sm:$0xff]
  %v1489 = vld [vmem:[%s8 + $0xd8] sm:$0xff]
  %v1490 = vld [vmem:[%s8 + $0xe0] sm:$0xff]
  %v1491 = vld [vmem:[%s8 + $0xe8] sm:$0xff]
  %v1492 = vld [vmem:[%s8 + $0xf0] sm:$0xff]
  %v1493 = vld [vmem:[%s8 + $0xf8] sm:$0xff]
  %v1494 = vld [vmem:[%s8 + $0x100] sm:$0xff]
  %v1495 = vld [vmem:[%s8 + $0x108] sm:$0xff]
  %v1496 = vld [vmem:[%s8 + $0x110] sm:$0xff]
  %v1497 = vld [vmem:[%s8 + $0x118] sm:$0xff]
  %v1498 = vld [vmem:[%s8 + $0x120] sm:$0xff]
  %v1499 = vld [vmem:[%s8 + $0x128] sm:$0xff]
  %v1500 = vld [vmem:[%s8 + $0x130] sm:$0xff]
  %v1501 = vld [vmem:[%s8 + $0x138] sm:$0xff]
  %v1502 = vld [vmem:[%s8 + $0x140] sm:$0xff]
  %v1503 = vld [vmem:[%s8 + $0x148] sm:$0xff]
  %v1504 = vld [vmem:[%s8 + $0x150] sm:$0xff]
  %v1505 = vld [vmem:[%s8 + $0x158] sm:$0xff]
  %v1506 = vld [vmem:[%s8 + $0x160] sm:$0xff]
  %v1507 = vld [vmem:[%s8 + $0x168] sm:$0xff]
  %v1508 = vld [vmem:[%s8 + $0x170] sm:$0xff]
  %v1509 = vld [vmem:[%s8 + $0x178] sm:$0xff]
  %v1510 = vld [vmem:[%s9] sm:$0x3]
  %v1512 = vperm.slane %v1510, 0
  %v1513 = vperm.slane %v1510, 1
  %v1540 = vunpack.c.l.b16 %v1438
  %v1541 = vunpack.c.l.b16 %v1439
  %v1542 = vunpack.c.l.b16 %v1440
  %v1543 = vunpack.c.l.b16 %v1441
  %v1544 = vunpack.c.l.b16 %v1442
  %v1545 = vunpack.c.l.b16 %v1443
  %v1546 = vunpack.c.l.b16 %v1444
  %v1547 = vunpack.c.l.b16 %v1445
  %v1548 = vunpack.c.l.b16 %v1446
  %v1549 = vunpack.c.l.b16 %v1447
  %v1550 = vunpack.c.l.b16 %v1448
  %v1551 = vunpack.c.l.b16 %v1449
  %v1552 = vunpack.c.l.b16 %v1450
  %v1553 = vunpack.c.l.b16 %v1451
  %v1554 = vunpack.c.l.b16 %v1452
  %v1555 = vunpack.c.l.b16 %v1453
  %v1556 = vunpack.c.l.b16 %v1454
  %v1557 = vunpack.c.l.b16 %v1455
  %v1558 = vunpack.c.l.b16 %v1456
  %v1559 = vunpack.c.l.b16 %v1457
  %v1560 = vunpack.c.l.b16 %v1458
  %v1561 = vunpack.c.l.b16 %v1459
  %v1562 = vunpack.c.l.b16 %v1460
  %v1563 = vunpack.c.l.b16 %v1461
  %vm1564 = vcmask 1041409
  %v1565 = vsel %vm1564, %v1543, %v1540
  %vm1566 = vcmask 1042434
  %v1567 = vsel %vm1566, %v1546, %v1565
  %vm1568 = vcmask 1043459
  %v1569 = vsel %vm1568, %v1549, %v1567
  %vm1570 = vcmask 1044484
  %v1571 = vsel %vm1570, %v1552, %v1569
  %vm1572 = vcmask 1045509
  %v1573 = vsel %vm1572, %v1555, %v1571
  %vm1574 = vcmask 1046534
  %v1575 = vsel %vm1574, %v1558, %v1573
  %vm1576 = vcmask 1047559
  %v1577 = vsel %vm1576, %v1561, %v1575
  %v1578 = vsel %vm1564, %v1544, %v1541
  %v1579 = vsel %vm1566, %v1547, %v1578
  %v1580 = vsel %vm1568, %v1550, %v1579
  %v1581 = vsel %vm1570, %v1553, %v1580
  %v1582 = vsel %vm1572, %v1556, %v1581
  %v1583 = vsel %vm1574, %v1559, %v1582
  %v1584 = vsel %vm1576, %v1562, %v1583
  %v1585 = vsel %vm1564, %v1545, %v1542
  %v1586 = vsel %vm1566, %v1548, %v1585
  %v1587 = vsel %vm1568, %v1551, %v1586
  %v1588 = vsel %vm1570, %v1554, %v1587
  %v1589 = vsel %vm1572, %v1557, %v1588
  %v1590 = vsel %vm1574, %v1560, %v1589
  %v1591 = vsel %vm1576, %v1563, %v1590
  %v1592 = vpack.c.b16 %v1577, %v1577
  %v1593 = vpack.c.b16 %v1584, %v1584
  %v1594 = vpack.c.b16 %v1591, %v1591
  %v1646 = vunpack.c.l.b16 %v1462
  %v1647 = vunpack.c.h.b16 %v1462
  %v1648 = vunpack.c.l.b16 %v1463
  %v1649 = vunpack.c.h.b16 %v1463
  %v1650 = vunpack.c.l.b16 %v1464
  %v1651 = vunpack.c.h.b16 %v1464
  %v1652 = vunpack.c.l.b16 %v1465
  %v1653 = vunpack.c.h.b16 %v1465
  %v1654 = vunpack.c.l.b16 %v1466
  %v1655 = vunpack.c.h.b16 %v1466
  %v1656 = vunpack.c.l.b16 %v1467
  %v1657 = vunpack.c.h.b16 %v1467
  %v1658 = vunpack.c.l.b16 %v1468
  %v1659 = vunpack.c.h.b16 %v1468
  %v1660 = vunpack.c.l.b16 %v1469
  %v1661 = vunpack.c.h.b16 %v1469
  %v1662 = vunpack.c.l.b16 %v1470
  %v1663 = vunpack.c.h.b16 %v1470
  %v1664 = vunpack.c.l.b16 %v1471
  %v1665 = vunpack.c.h.b16 %v1471
  %v1666 = vunpack.c.l.b16 %v1472
  %v1667 = vunpack.c.h.b16 %v1472
  %v1668 = vunpack.c.l.b16 %v1473
  %v1669 = vunpack.c.h.b16 %v1473
  %v1670 = vunpack.c.l.b16 %v1474
  %v1671 = vunpack.c.h.b16 %v1474
  %v1672 = vunpack.c.l.b16 %v1475
  %v1673 = vunpack.c.h.b16 %v1475
  %v1674 = vunpack.c.l.b16 %v1476
  %v1675 = vunpack.c.h.b16 %v1476
  %v1676 = vunpack.c.l.b16 %v1477
  %v1677 = vunpack.c.h.b16 %v1477
  %v1678 = vunpack.c.l.b16 %v1478
  %v1679 = vunpack.c.h.b16 %v1478
  %v1680 = vunpack.c.l.b16 %v1479
  %v1681 = vunpack.c.h.b16 %v1479
  %v1682 = vunpack.c.l.b16 %v1480
  %v1683 = vunpack.c.h.b16 %v1480
  %v1684 = vunpack.c.l.b16 %v1481
  %v1685 = vunpack.c.h.b16 %v1481
  %v1686 = vunpack.c.l.b16 %v1482
  %v1687 = vunpack.c.h.b16 %v1482
  %v1688 = vunpack.c.l.b16 %v1483
  %v1689 = vunpack.c.h.b16 %v1483
  %v1690 = vunpack.c.l.b16 %v1484
  %v1691 = vunpack.c.h.b16 %v1484
  %v1692 = vunpack.c.l.b16 %v1485
  %v1693 = vunpack.c.h.b16 %v1485
  %v1694 = vunpack.c.l.b16 %v1486
  %v1695 = vunpack.c.h.b16 %v1486
  %v1696 = vunpack.c.l.b16 %v1487
  %v1697 = vunpack.c.h.b16 %v1487
  %v1698 = vunpack.c.l.b16 %v1488
  %v1699 = vunpack.c.h.b16 %v1488
  %v1700 = vunpack.c.l.b16 %v1489
  %v1701 = vunpack.c.h.b16 %v1489
  %v1702 = vunpack.c.l.b16 %v1490
  %v1703 = vunpack.c.h.b16 %v1490
  %v1704 = vunpack.c.l.b16 %v1491
  %v1705 = vunpack.c.h.b16 %v1491
  %v1706 = vunpack.c.l.b16 %v1492
  %v1707 = vunpack.c.h.b16 %v1492
  %v1708 = vunpack.c.l.b16 %v1493
  %v1709 = vunpack.c.h.b16 %v1493
  %v1710 = vunpack.c.l.b16 %v1494
  %v1711 = vunpack.c.h.b16 %v1494
  %v1712 = vunpack.c.l.b16 %v1495
  %v1713 = vunpack.c.h.b16 %v1495
  %v1714 = vunpack.c.l.b16 %v1496
  %v1715 = vunpack.c.h.b16 %v1496
  %v1716 = vunpack.c.l.b16 %v1497
  %v1717 = vunpack.c.h.b16 %v1497
  %v1718 = vunpack.c.l.b16 %v1498
  %v1719 = vunpack.c.h.b16 %v1498
  %v1720 = vunpack.c.l.b16 %v1499
  %v1721 = vunpack.c.h.b16 %v1499
  %v1722 = vunpack.c.l.b16 %v1500
  %v1723 = vunpack.c.h.b16 %v1500
  %v1724 = vunpack.c.l.b16 %v1501
  %v1725 = vunpack.c.h.b16 %v1501
  %v1726 = vunpack.c.l.b16 %v1502
  %v1727 = vunpack.c.h.b16 %v1502
  %v1728 = vunpack.c.l.b16 %v1503
  %v1729 = vunpack.c.h.b16 %v1503
  %v1730 = vunpack.c.l.b16 %v1504
  %v1731 = vunpack.c.h.b16 %v1504
  %v1732 = vunpack.c.l.b16 %v1505
  %v1733 = vunpack.c.h.b16 %v1505
  %v1734 = vunpack.c.l.b16 %v1506
  %v1735 = vunpack.c.h.b16 %v1506
  %v1736 = vunpack.c.l.b16 %v1507
  %v1737 = vunpack.c.h.b16 %v1507
  %v1738 = vunpack.c.l.b16 %v1508
  %v1739 = vunpack.c.h.b16 %v1508
  %v1740 = vunpack.c.l.b16 %v1509
  %v1741 = vunpack.c.h.b16 %v1509
  %v1742 = vpack.c.b16 %v1648, %v1646
  %v1743 = vpack.c.b16 %v1649, %v1647
  %v1744 = vpack.c.b16 %v1652, %v1650
  %v1745 = vpack.c.b16 %v1653, %v1651
  %v1746 = vpack.c.b16 %v1656, %v1654
  %v1747 = vpack.c.b16 %v1657, %v1655
  %v1748 = vpack.c.b16 %v1660, %v1658
  %v1749 = vpack.c.b16 %v1661, %v1659
  %v1750 = vpack.c.b16 %v1664, %v1662
  %v1751 = vpack.c.b16 %v1665, %v1663
  %v1752 = vpack.c.b16 %v1668, %v1666
  %v1753 = vpack.c.b16 %v1669, %v1667
  %v1754 = vpack.c.b16 %v1672, %v1670
  %v1755 = vpack.c.b16 %v1673, %v1671
  %v1756 = vpack.c.b16 %v1676, %v1674
  %v1757 = vpack.c.b16 %v1677, %v1675
  %v1758 = vpack.c.b16 %v1680, %v1678
  %v1759 = vpack.c.b16 %v1681, %v1679
  %v1760 = vpack.c.b16 %v1684, %v1682
  %v1761 = vpack.c.b16 %v1685, %v1683
  %v1762 = vpack.c.b16 %v1688, %v1686
  %v1763 = vpack.c.b16 %v1689, %v1687
  %v1764 = vpack.c.b16 %v1692, %v1690
  %v1765 = vpack.c.b16 %v1693, %v1691
  %v1766 = vpack.c.b16 %v1696, %v1694
  %v1767 = vpack.c.b16 %v1697, %v1695
  %v1768 = vpack.c.b16 %v1700, %v1698
  %v1769 = vpack.c.b16 %v1701, %v1699
  %v1770 = vpack.c.b16 %v1704, %v1702
  %v1771 = vpack.c.b16 %v1705, %v1703
  %v1772 = vpack.c.b16 %v1708, %v1706
  %v1773 = vpack.c.b16 %v1709, %v1707
  %v1774 = vpack.c.b16 %v1712, %v1710
  %v1775 = vpack.c.b16 %v1713, %v1711
  %v1776 = vpack.c.b16 %v1716, %v1714
  %v1777 = vpack.c.b16 %v1717, %v1715
  %v1778 = vpack.c.b16 %v1720, %v1718
  %v1779 = vpack.c.b16 %v1721, %v1719
  %v1780 = vpack.c.b16 %v1724, %v1722
  %v1781 = vpack.c.b16 %v1725, %v1723
  %v1782 = vpack.c.b16 %v1728, %v1726
  %v1783 = vpack.c.b16 %v1729, %v1727
  %v1784 = vpack.c.b16 %v1732, %v1730
  %v1785 = vpack.c.b16 %v1733, %v1731
  %v1786 = vpack.c.b16 %v1736, %v1734
  %v1787 = vpack.c.b16 %v1737, %v1735
  %v1788 = vpack.c.b16 %v1740, %v1738
  %v1789 = vpack.c.b16 %v1741, %v1739
  %1838 = vmatpush.bf16.msra.mxu0 %v1756
  %1839 = vmatpush.bf16.msra.mxu0 %v1754
  %1840 = vmatpush.bf16.msra.mxu0 %v1752
  %1841 = vmatpush.bf16.msra.mxu0 %v1750
  %1842 = vmatpush.bf16.msra.mxu0 %v1748
  %1843 = vmatpush.bf16.msra.mxu0 %v1746
  %1844 = vmatpush.bf16.msra.mxu0 %v1744
  %1845 = vmatpush.bf16.msra.mxu0 %v1742
  %1846 = vmatmul.bf16.gmra.mxu0 %v1592
  %v1847 = vpop.f32.mrf.mxu0
  %v1848 = vadd.f32 %v1512, %v1847
  %v1849 = vpop.f32.mrf.mxu0
  %1850 = vdwg.mxu0
  %1851 = vmatpush.bf16.msra.mxu0 %v1772
  %1852 = vmatpush.bf16.msra.mxu0 %v1770
  %1853 = vmatpush.bf16.msra.mxu0 %v1768
  %1854 = vmatpush.bf16.msra.mxu0 %v1766
  %1855 = vmatpush.bf16.msra.mxu0 %v1764
  %1856 = vmatpush.bf16.msra.mxu0 %v1762
  %1857 = vmatpush.bf16.msra.mxu0 %v1760
  %1858 = vmatpush.bf16.msra.mxu0 %v1758
  %1859 = vmatmul.bf16.gmra.mxu0 %v1593
  %v1860 = vpop.f32.mrf.mxu0
  %v1861 = vadd.f32 %v1848, %v1860
  %v1862 = vpop.f32.mrf.mxu0
  %1863 = vdwg.mxu0
  %1864 = vmatpush.bf16.msra.mxu0 %v1788
  %1865 = vmatpush.bf16.msra.mxu0 %v1786
  %1866 = vmatpush.bf16.msra.mxu0 %v1784
  %1867 = vmatpush.bf16.msra.mxu0 %v1782
  %1868 = vmatpush.bf16.msra.mxu0 %v1780
  %1869 = vmatpush.bf16.msra.mxu0 %v1778
  %1870 = vmatpush.bf16.msra.mxu0 %v1776
  %1871 = vmatpush.bf16.msra.mxu0 %v1774
  %1872 = vmatmul.bf16.gmra.mxu0 %v1594
  %v1873 = vpop.f32.mrf.mxu0
  %v1874 = vadd.f32 %v1861, %v1873
  %v1875 = vpop.f32.mrf.mxu0
  %1876 = vdwg.mxu0
  %1877 = vmatpush.bf16.msra.mxu0 %v1757
  %1878 = vmatpush.bf16.msra.mxu0 %v1755
  %1879 = vmatpush.bf16.msra.mxu0 %v1753
  %1880 = vmatpush.bf16.msra.mxu0 %v1751
  %1881 = vmatpush.bf16.msra.mxu0 %v1749
  %1882 = vmatpush.bf16.msra.mxu0 %v1747
  %1883 = vmatpush.bf16.msra.mxu0 %v1745
  %1884 = vmatpush.bf16.msra.mxu0 %v1743
  %1885 = vmatmul.bf16.gmra.mxu0 %v1592
  %v1886 = vpop.f32.mrf.mxu0
  %v1887 = vadd.f32 %v1513, %v1886
  %v1888 = vpop.f32.mrf.mxu0
  %1889 = vdwg.mxu0
  %1890 = vmatpush.bf16.msra.mxu0 %v1773
  %1891 = vmatpush.bf16.msra.mxu0 %v1771
  %1892 = vmatpush.bf16.msra.mxu0 %v1769
  %1893 = vmatpush.bf16.msra.mxu0 %v1767
  %1894 = vmatpush.bf16.msra.mxu0 %v1765
  %1895 = vmatpush.bf16.msra.mxu0 %v1763
  %1896 = vmatpush.bf16.msra.mxu0 %v1761
  %1897 = vmatpush.bf16.msra.mxu0 %v1759
  %1898 = vmatmul.bf16.gmra.mxu0 %v1593
  %v1899 = vpop.f32.mrf.mxu0
  %v1900 = vadd.f32 %v1887, %v1899
  %v1901 = vpop.f32.mrf.mxu0
  %1902 = vdwg.mxu0
  %1903 = vmatpush.bf16.msra.mxu0 %v1789
  %1904 = vmatpush.bf16.msra.mxu0 %v1787
  %1905 = vmatpush.bf16.msra.mxu0 %v1785
  %1906 = vmatpush.bf16.msra.mxu0 %v1783
  %1907 = vmatpush.bf16.msra.mxu0 %v1781
  %1908 = vmatpush.bf16.msra.mxu0 %v1779
  %1909 = vmatpush.bf16.msra.mxu0 %v1777
  %1910 = vmatpush.bf16.msra.mxu0 %v1775
  %1911 = vmatmul.bf16.gmra.mxu0 %v1594
  %v1912 = vpop.f32.mrf.mxu0
  %v1913 = vadd.f32 %v1900, %v1912
  %v1914 = vpop.f32.mrf.mxu0
  %1915 = vdwg.mxu0
  %v1916 = vmax.f32 %v1874, 0.0
  %v1917 = vmax.f32 %v1913, 0.0
  %v1918 = vld [vmem:[%s2] sm:$0xff]
  %v1919 = vld [vmem:[%s10] sm:$0x3]
  %1921 = vset.pattern.permute.xlu0 0
  %1922 = vperm.xlu0 %1921, %v1918
  %v1923 = vpop.permute.xlu0 %1922
  %v1926 = vperm.slane %v1919, 0
  %v1927 = vperm.slane %v1919, 1
  %v1930 = vmul.f32 %v1923, %v1926
  %v1931 = vmul.f32 %v1923, %v1927
  %v1932 = vld [vmem:[%s11] sm:$0x3]
  %v1934 = vperm.slane %v1932, 0
  %v1935 = vperm.slane %v1932, 1
  %v1938 = vadd.f32 %v1930, %v1934
  %v1939 = vadd.f32 %v1931, %v1935
  %v1940 = vmax.f32 %v1938, 0.0
  %v1941 = vmax.f32 %v1939, 0.0
  %v1942 = vadd.f32 %v177, %v1916
  %v1943 = vadd.f32 %v178, %v1917
  %v1944 = vadd.f32 %v1942, %v1940
  %v1945 = vadd.f32 %v1943, %v1941
  %v1946 = vpack.c.bf16 %v1944, %v1944
  %v1947 = vpack.c.bf16 %v1945, %v1945
  %v1948 = vld [vmem:[%s12] sm:$0xf]
  %v1949 = vld [vmem:[%s12 + $0x4] sm:$0xf]
  %v1950 = vld [vmem:[%s12 + $0x8] sm:$0xf]
  %v1951 = vld [vmem:[%s12 + $0xc] sm:$0xf]
  %v1952 = vld [vmem:[%s12 + $0x10] sm:$0xf]
  %v1953 = vld [vmem:[%s12 + $0x14] sm:$0xf]
  %v1954 = vld [vmem:[%s12 + $0x18] sm:$0xf]
  %v1955 = vld [vmem:[%s12 + $0x1c] sm:$0xf]
  %v1956 = vld [vmem:[%s12 + $0x20] sm:$0xf]
  %v1957 = vld [vmem:[%s12 + $0x24] sm:$0xf]
  %v1958 = vld [vmem:[%s12 + $0x28] sm:$0xf]
  %v1959 = vld [vmem:[%s12 + $0x2c] sm:$0xf]
  %v1960 = vld [vmem:[%s12 + $0x30] sm:$0xf]
  %v1961 = vld [vmem:[%s12 + $0x34] sm:$0xf]
  %v1962 = vld [vmem:[%s12 + $0x38] sm:$0xf]
  %v1963 = vld [vmem:[%s12 + $0x3c] sm:$0xf]
  %v1964 = vld [vmem:[%s12 + $0x40] sm:$0xf]
  %v1965 = vld [vmem:[%s12 + $0x44] sm:$0xf]
  %v1966 = vld [vmem:[%s12 + $0x48] sm:$0xf]
  %v1967 = vld [vmem:[%s12 + $0x4c] sm:$0xf]
  %v1968 = vld [vmem:[%s12 + $0x50] sm:$0xf]
  %v1969 = vld [vmem:[%s12 + $0x54] sm:$0xf]
  %v1970 = vld [vmem:[%s12 + $0x58] sm:$0xf]
  %v1971 = vld [vmem:[%s12 + $0x5c] sm:$0xf]
  %v1972 = vld [vmem:[%s12 + $0x60] sm:$0xf]
  %v1973 = vld [vmem:[%s12 + $0x64] sm:$0xf]
  %v1974 = vld [vmem:[%s12 + $0x68] sm:$0xf]
  %v1975 = vld [vmem:[%s12 + $0x6c] sm:$0xf]
  %v1976 = vld [vmem:[%s12 + $0x70] sm:$0xf]
  %v1977 = vld [vmem:[%s12 + $0x74] sm:$0xf]
  %v1978 = vld [vmem:[%s12 + $0x78] sm:$0xf]
  %v1979 = vld [vmem:[%s12 + $0x7c] sm:$0xf]
  %v1980 = vld [vmem:[%s13] sm:$0x1]
  %v1982 = vperm.slane %v1980, 0
  %v2016 = vunpack.c.l.b16 %v1948
  %v2017 = vunpack.c.l.b16 %v1949
  %v2018 = vunpack.c.l.b16 %v1950
  %v2019 = vunpack.c.l.b16 %v1951
  %v2020 = vunpack.c.l.b16 %v1952
  %v2021 = vunpack.c.l.b16 %v1953
  %v2022 = vunpack.c.l.b16 %v1954
  %v2023 = vunpack.c.l.b16 %v1955
  %v2024 = vunpack.c.l.b16 %v1956
  %v2025 = vunpack.c.l.b16 %v1957
  %v2026 = vunpack.c.l.b16 %v1958
  %v2027 = vunpack.c.l.b16 %v1959
  %v2028 = vunpack.c.l.b16 %v1960
  %v2029 = vunpack.c.l.b16 %v1961
  %v2030 = vunpack.c.l.b16 %v1962
  %v2031 = vunpack.c.l.b16 %v1963
  %v2032 = vunpack.c.l.b16 %v1964
  %v2033 = vunpack.c.l.b16 %v1965
  %v2034 = vunpack.c.l.b16 %v1966
  %v2035 = vunpack.c.l.b16 %v1967
  %v2036 = vunpack.c.l.b16 %v1968
  %v2037 = vunpack.c.l.b16 %v1969
  %v2038 = vunpack.c.l.b16 %v1970
  %v2039 = vunpack.c.l.b16 %v1971
  %v2040 = vunpack.c.l.b16 %v1972
  %v2041 = vunpack.c.l.b16 %v1973
  %v2042 = vunpack.c.l.b16 %v1974
  %v2043 = vunpack.c.l.b16 %v1975
  %v2044 = vunpack.c.l.b16 %v1976
  %v2045 = vunpack.c.l.b16 %v1977
  %v2046 = vunpack.c.l.b16 %v1978
  %v2047 = vunpack.c.l.b16 %v1979
  %v2048 = vpack.c.b16 %v2017, %v2016
  %v2049 = vpack.c.b16 %v2019, %v2018
  %v2050 = vpack.c.b16 %v2021, %v2020
  %v2051 = vpack.c.b16 %v2023, %v2022
  %v2052 = vpack.c.b16 %v2025, %v2024
  %v2053 = vpack.c.b16 %v2027, %v2026
  %v2054 = vpack.c.b16 %v2029, %v2028
  %v2055 = vpack.c.b16 %v2031, %v2030
  %v2056 = vpack.c.b16 %v2033, %v2032
  %v2057 = vpack.c.b16 %v2035, %v2034
  %v2058 = vpack.c.b16 %v2037, %v2036
  %v2059 = vpack.c.b16 %v2039, %v2038
  %v2060 = vpack.c.b16 %v2041, %v2040
  %v2061 = vpack.c.b16 %v2043, %v2042
  %v2062 = vpack.c.b16 %v2045, %v2044
  %v2063 = vpack.c.b16 %v2047, %v2046
  %2080 = vmatpush.bf16.msra.mxu0 %v2055
  %2081 = vmatpush.bf16.msra.mxu0 %v2054
  %2082 = vmatpush.bf16.msra.mxu0 %v2053
  %2083 = vmatpush.bf16.msra.mxu0 %v2052
  %2084 = vmatpush.bf16.msra.mxu0 %v2051
  %2085 = vmatpush.bf16.msra.mxu0 %v2050
  %2086 = vmatpush.bf16.msra.mxu0 %v2049
  %2087 = vmatpush.bf16.msra.mxu0 %v2048
  %2088 = vmatmul.bf16.gmra.mxu0 %v1946
  %v2089 = vpop.f32.mrf.mxu0
  %v2090 = vadd.f32 %v1982, %v2089
  %v2091 = vpop.f32.mrf.mxu0
  %2092 = vdwg.mxu0
  %2093 = vmatpush.bf16.msra.mxu0 %v2063
  %2094 = vmatpush.bf16.msra.mxu0 %v2062
  %2095 = vmatpush.bf16.msra.mxu0 %v2061
  %2096 = vmatpush.bf16.msra.mxu0 %v2060
  %2097 = vmatpush.bf16.msra.mxu0 %v2059
  %2098 = vmatpush.bf16.msra.mxu0 %v2058
  %2099 = vmatpush.bf16.msra.mxu0 %v2057
  %2100 = vmatpush.bf16.msra.mxu0 %v2056
  %2101 = vmatmul.bf16.gmra.mxu0 %v1947
  %v2102 = vpop.f32.mrf.mxu0
  %v2103 = vadd.f32 %v2090, %v2102
  %v2104 = vpop.f32.mrf.mxu0
  %2105 = vdwg.mxu0
  %2106 = vst [vmem:[%s14] sm:$0xff] %v2103
  // Predicated region
  $region58: #{pal_forward.1} parent=0 // pred_check
    _
  $region59: #{pal_forward.1} parent=0 // pred_check_branch
    %2108 = sbr.rel (0) target = $region61
  $region60: #{pal_forward.1} parent=0 // pred_region
    _
  $region61: #{pal_forward.1} parent=0 // pred_fallthru
    _
  // Predicated region
  $region62: #{pal_forward.1} parent=0 // pred_check
    _
  $region63: #{pal_forward.1} parent=0 // pred_check_branch
    %2110 = sbr.rel (0) target = $region65
  $region64: #{pal_forward.1} parent=0 // pred_region
    _
  $region65: #{pal_forward.1} parent=0 // pred_fallthru
    _

</llo_original>
